<compile_context>
chip_gen: v6e
topology: v6e:2x2x1
jax: 0.10.0
libtpu: 0.0.40
codegen_flags: <defaults>
</compile_context>

<pallas_src>
import jax
import jax.numpy as jnp
import numpy as np
from jax.experimental import pallas as pl
from jax.experimental.pallas import tpu as pltpu

BN_EPS = 1e-5
_LANE = 128          # lane width (last dim): feature dims padded to multiples of 128
_ROW_ALIGN = 16      # bf16 sublane packing: batch tiles are multiples of 16 rows


def _round_up(x, m):
    return ((x + m - 1) // m) * m


def _vmem_limit(estimate_bytes):
    # Portable across v5e/v6e (128 MiB physical VMEM) and v7x (64 MiB): raise above
    # the 16/32 MiB scoped defaults, never past ~3/4 of v7x's physical VMEM.
    return int(min(48 * 2**20, max(32 * 2**20, 2 * int(estimate_bytes))))


# --------------------------------- kernels ----------------------------------- #

def _make_hidden_kernel(*, has_in_bn, tile_m, true_n, n_tiles, compute_dtype):
    """Fused [BN(prev) ->] Linear -> ReLU -> partial-BN-stats kernel (one batch tile)."""
    last = n_tiles - 1
    rows_last = true_n - last * tile_m
    ragged = rows_last != tile_m

    def kernel(*refs):
        if has_in_bn:
            x_ref, a_ref, c_ref, w_ref, b_ref, h_ref, p_ref = refs
        else:
            x_ref, w_ref, b_ref, h_ref, p_ref = refs

        x = x_ref[...]
        if has_in_bn:
            # Apply previous layer's BatchNorm with precomputed per-feature coeffs (f32).
            x = x.astype(jnp.float32) * a_ref[...] + c_ref[...]
        act = x.astype(compute_dtype)

        # Linear (MXU, f32 accumulation) + bias + ReLU (relu_last=False -> ReLU before BN)
        h = jnp.dot(act, w_ref[...], preferred_element_type=jnp.float32)
        h = jnp.maximum(h + b_ref[...], 0.0)
        h_ref[...] = h.astype(h_ref.dtype)   # pre-BN activation -> HBM (read by next layer)

        cout = h.shape[1]

        def partial_stats(h_sum_src, mask, rows):
            # Per-tile [sum, M2-about-tile-mean]; Chan-combined across tiles in JAX.
            s = jnp.sum(h_sum_src, axis=0, keepdims=True)        # (1, cout)
            d = h - s * (1.0 / rows)
            if mask is not None:
                d = d * mask                                     # zero padded rows
            m2 = jnp.sum(d * d, axis=0, keepdims=True)           # (1, cout)
            return jnp.concatenate([s, m2], axis=0).reshape(1, 2, cout)

        if not ragged:
            p_ref[...] = partial_stats(h, None, tile_m)
        else:
            i = pl.program_id(0)

            @pl.when(i != last)      # full tiles: no masking work at all
            def _():
                p_ref[...] = partial_stats(h, None, tile_m)

            @pl.when(i == last)      # only the ragged last tile masks its padded rows
            def _():
                row_ids = jax.lax.broadcasted_iota(jnp.int32, (tile_m, 1), 0)
                mask = (row_ids < rows_last).astype(jnp.float32)
                p_ref[...] = partial_stats(h * mask, mask, rows_last)

    return kernel


def _make_final_kernel(*, compute_dtype):
    """Fused BN(prev) -> Linear kernel for the output layer (one batch tile)."""
    def kernel(x_ref, a_ref, c_ref, w_ref, b_ref, o_ref):
        x = x_ref[...].astype(jnp.float32) * a_ref[...] + c_ref[...]
        o = jnp.dot(x.astype(compute_dtype), w_ref[...],
                    preferred_element_type=jnp.float32) + b_ref[...]
        o_ref[...] = o.astype(o_ref.dtype)
    return kernel


# ------------------------------ pallas_call wrappers -------------------------- #

def _hidden_layer_call(x, a_in, c_in, w_p, b_p, *, tile_m, n_tiles, true_n, compute_dtype):
    n_pad, cin = x.shape
    cout = w_p.shape[1]
    has_in_bn = a_in is not None

    kernel = _make_hidden_kernel(has_in_bn=has_in_bn, tile_m=tile_m, true_n=true_n,
                                 n_tiles=n_tiles, compute_dtype=compute_dtype)

    in_ops = [x] + ([a_in, c_in] if has_in_bn else []) + [w_p, b_p]
    in_specs = [pl.BlockSpec((tile_m, cin), lambda i: (i, 0))]
    if has_in_bn:
        in_specs += [pl.BlockSpec((1, cin), lambda i: (0, 0)),
                     pl.BlockSpec((1, cin), lambda i: (0, 0))]
    in_specs += [pl.BlockSpec((cin, cout), lambda i: (0, 0)),   # weights: VMEM-resident
                 pl.BlockSpec((1, cout), lambda i: (0, 0))]

    out_shape = (jax.ShapeDtypeStruct((n_pad, cout), compute_dtype),     # pre-BN h
                 jax.ShapeDtypeStruct((n_tiles, 2, cout), jnp.float32))  # [sum, M2] per tile
    out_specs = (pl.BlockSpec((tile_m, cout), lambda i: (i, 0)),
                 pl.BlockSpec((1, 2, cout), lambda i: (i, 0, 0)))

    x_isz = np.dtype(x.dtype).itemsize
    cd_isz = np.dtype(compute_dtype).itemsize
    block_bytes = (tile_m * cin * x_isz + (2 * cin * 4 if has_in_bn else 0)
                   + cin * cout * cd_isz + cout * 4
                   + tile_m * cout * cd_isz + 2 * cout * 4)
    vmem_est = 2 * block_bytes + 2 * tile_m * cout * 4      # + live f32 h / centered tiles
    bytes_accessed = (x.size * x_isz + w_p.size * cd_isz
                      + (b_p.size + (a_in.size + c_in.size if has_in_bn else 0)) * 4
                      + n_pad * cout * cd_isz + n_tiles * 2 * cout * 4)

    return pl.pallas_call(
        kernel,
        grid=(n_tiles,),
        in_specs=in_specs,
        out_specs=out_specs,
        out_shape=out_shape,
        compiler_params=pltpu.CompilerParams(
            dimension_semantics=("parallel",),          # batch tiles independent -> megacore
            vmem_limit_bytes=_vmem_limit(vmem_est)),
        cost_estimate=pl.CostEstimate(flops=int(2 * n_pad * cin * cout),
                                      transcendentals=0,
                                      bytes_accessed=int(bytes_accessed)),
    )(*in_ops)


def _final_layer_call(x, a_in, c_in, w_p, b_p, *, tile_m, n_tiles, compute_dtype, out_dtype):
    n_pad, cin = x.shape
    cout = w_p.shape[1]
    kernel = _make_final_kernel(compute_dtype=compute_dtype)

    in_specs = [pl.BlockSpec((tile_m, cin), lambda i: (i, 0)),
                pl.BlockSpec((1, cin), lambda i: (0, 0)),
                pl.BlockSpec((1, cin), lambda i: (0, 0)),
                pl.BlockSpec((cin, cout), lambda i: (0, 0)),
                pl.BlockSpec((1, cout), lambda i: (0, 0))]
    out_spec = pl.BlockSpec((tile_m, cout), lambda i: (i, 0))

    x_isz = np.dtype(x.dtype).itemsize
    cd_isz = np.dtype(compute_dtype).itemsize
    o_isz = np.dtype(out_dtype).itemsize
    block_bytes = (tile_m * cin * x_isz + 2 * cin * 4 + cin * cout * cd_isz
                   + cout * 4 + tile_m * cout * o_isz)
    bytes_accessed = (x.size * x_isz + w_p.size * cd_isz
                      + (b_p.size + a_in.size + c_in.size) * 4 + n_pad * cout * o_isz)

    return pl.pallas_call(
        kernel,
        grid=(n_tiles,),
        in_specs=in_specs,
        out_specs=out_spec,
        out_shape=jax.ShapeDtypeStruct((n_pad, cout), out_dtype),
        compiler_params=pltpu.CompilerParams(
            dimension_semantics=("parallel",),
            vmem_limit_bytes=_vmem_limit(2 * block_bytes + 2 * tile_m * cout * 4)),
        cost_estimate=pl.CostEstimate(flops=int(2 * n_pad * cin * cout),
                                      transcendentals=0,
                                      bytes_accessed=int(bytes_accessed)),
    )(x, a_in, c_in, w_p, b_p)


# ------------------------- cross-tile BN statistics combine ------------------- #

def _bn_coeffs(partials, gamma_p, beta_p, rows_per_tile, true_n):
    """Chan-combine per-tile [sum, M2] into per-feature BN scale/shift (tiny JAX op)."""
    sums = partials[:, 0, :]                         # (T, C)
    m2s = partials[:, 1, :]                          # (T, C)
    mean = jnp.sum(sums, axis=0) / float(true_n)     # (C,)
    tile_mean = sums / rows_per_tile[:, None]
    m2 = jnp.sum(m2s, axis=0) + jnp.sum(
        rows_per_tile[:, None] * (tile_mean - mean[None, :]) ** 2, axis=0)
    var = jnp.maximum(m2 / float(true_n), 0.0)       # biased variance (training-mode BN)
    a = gamma_p * jax.lax.rsqrt(var + BN_EPS)[None, :]
    c = beta_p - mean[None, :] * a
    return a, c                                      # each (1, C), f32


# ------------------------- one-time parameter preparation --------------------- #

def prepare_params(params, in_channels, compute_dtype=jnp.bfloat16):
    """Pad feature dims to multiples of 128 and cast weights ONCE (outside per-call path).
    bf16 is the production compute dtype (v5e/v6e/v7x MXU); f32 is test-only."""
    lins, bns = params["lins"], params["bns"]
    dims = [in_channels] + [w.shape[1] for (w, _) in lins]
    pdims = [max(_LANE, _round_up(d, _LANE)) for d in dims]

    lin_p, bn_p = [], []
    for i, (w, b) in enumerate(lins):
        wp = jnp.zeros((pdims[i], pdims[i + 1]), compute_dtype)
        wp = wp.at[:w.shape[0], :w.shape[1]].set(w.astype(compute_dtype))
        bp = jnp.zeros((1, pdims[i + 1]), jnp.float32).at[:, :b.shape[1]].set(b)
        lin_p.append((wp, bp))
    for i, (g, bt) in enumerate(bns):
        gp = jnp.zeros((1, pdims[i + 1]), jnp.float32).at[:, :g.shape[1]].set(g)
        btp = jnp.zeros((1, pdims[i + 1]), jnp.float32).at[:, :bt.shape[1]].set(bt)
        bn_p.append((gp, btp))
    return {"lins": lin_p, "bns": bn_p, "dims": dims, "pdims": pdims,
            "compute_dtype": compute_dtype}


# ----------------------------------- forward ---------------------------------- #

def mlp_forward(prep, x, *, tile_m=512, out_dtype=jnp.float32):
    """Batch-tiled forward pass.  out_dtype=jnp.bfloat16 halves final-store HBM traffic
    if downstream accepts it (kept f32 by default to match the PyTorch module)."""
    cd = prep["compute_dtype"]
    dims, pdims = prep["dims"], prep["pdims"]
    n, in_c = x.shape
    assert in_c == dims[0]
    num_hidden = len(prep["bns"])
    assert num_hidden >= 1, "num_layers must be >= 2"

    # batch tile: multiple of 16 rows (bf16 sublane packing), no larger than needed
    tm = max(_ROW_ALIGN, _round_up(min(tile_m, _round_up(n, _ROW_ALIGN)), _ROW_ALIGN))
    n_tiles = -(-n // tm)
    n_pad = n_tiles * tm

    # pad x only when misaligned (cast to compute dtype happens inside the kernel)
    if (n, in_c) != (n_pad, pdims[0]):
        xp = jnp.zeros((n_pad, pdims[0]), x.dtype).at[:n, :in_c].set(x)
    else:
        xp = x

    rows_last = n - (n_tiles - 1) * tm
    rows_per_tile = jnp.full((n_tiles,), float(tm), jnp.float32).at[-1].set(float(rows_last))

    cur, a, c = xp, None, None
    for i in range(num_hidden):
        wp, bp = prep["lins"][i]
        gp, btp = prep["bns"][i]
        cur, partials = _hidden_layer_call(cur, a, c, wp, bp, tile_m=tm, n_tiles=n_tiles,
                                           true_n=n, compute_dtype=cd)
        a, c = _bn_coeffs(partials, gp, btp, rows_per_tile, n)
        # dropout p = 0.0 -> identity

    wp, bp = prep["lins"][-1]
    y = _final_layer_call(cur, a, c, wp, bp, tile_m=tm, n_tiles=n_tiles,
                          compute_dtype=cd, out_dtype=out_dtype)
    return y[:n, :dims[-1]]


# ----------------------------- parameter construction ------------------------- #

def init_mlp_params(key, in_channels, hidden_channels, out_channels, num_layers):
    """Deterministic init mirroring PyTorch Linear default (uniform +-1/sqrt(fan_in))
    and BatchNorm1d default (gamma=1, beta=0).  Weights stored as (in, out)."""
    dims = [in_channels] + [hidden_channels] * (num_layers - 1) + [out_channels]
    params = {"lins": [], "bns": []}
    for i in range(num_layers):
        fan_in, fan_out = dims[i], dims[i + 1]
        key, kw, kb = jax.random.split(key, 3)
        bound = 1.0 / jnp.sqrt(jnp.float32(fan_in))
        w = jax.random.uniform(kw, (fan_in, fan_out), jnp.float32, -bound, bound)
        b = jax.random.uniform(kb, (1, fan_out), jnp.float32, -bound, bound)
        params["lins"].append((w, b))
    for _ in range(num_layers - 1):
        params["bns"].append((jnp.ones((1, hidden_channels), jnp.float32),
                              jnp.zeros((1, hidden_channels), jnp.float32)))
    return params


# ---------------------------------- reference ---------------------------------- #

def mlp_reference(params, x, compute_dtype=jnp.float32):
    """Pure-JAX reference of MLP.forward (relu_last=False, dropout=0, training BN).
    For bf16 it also mimics the kernel's bf16 inter-layer activation storage."""
    for (w, b), (g, bt) in zip(params["lins"][:-1], params["bns"]):
        h = jnp.dot(x.astype(compute_dtype), w.astype(compute_dtype),
                    preferred_element_type=jnp.float32) + b
        h = jnp.maximum(h, 0.0)
        if compute_dtype != jnp.float32:
            h = h.astype(compute_dtype).astype(jnp.float32)
        mean = jnp.mean(h, axis=0, keepdims=True)
        var = jnp.mean((h - mean) ** 2, axis=0, keepdims=True)
        x = (h - mean) * jax.lax.rsqrt(var + BN_EPS) * g + bt
    w, b = params["lins"][-1]
    return jnp.dot(x.astype(compute_dtype), w.astype(compute_dtype),
                   preferred_element_type=jnp.float32) + b


# ------------------------------------ main ------------------------------------- #

if __name__ == "__main__":
    key = jax.random.PRNGKey(0)
    # Batch deliberately NOT a multiple of the tile: with tile_m=64 this gives 3 full
    # tiles + an 8-row ragged tail, exercising the cross-tile BN combine and the
    # pl.when-gated padded-row masking.
    N, IN, HID, OUT, L = 200, 48, 64, 10, 3

    key, kx = jax.random.split(key)
    x = jax.random.normal(kx, (N, IN), jnp.float32)
    params = init_mlp_params(key, IN, HID, OUT, L)

    # 1) f32 compute path (test-only): check vs the PyTorch-equivalent reference.
    prep32 = prepare_params(params, IN, compute_dtype=jnp.float32)
    fwd32 = jax.jit(lambda xx: mlp_forward(prep32, xx, tile_m=64))
    y32 = jax.block_until_ready(fwd32(x))
    y_ref32 = mlp_reference(params, x, jnp.float32)
    assert y32.shape == (N, OUT)
    assert jnp.allclose(y32, y_ref32, atol=2e-2, rtol=2e-2), "f32 mismatch vs reference"

    # 1b) non-ragged multi-tile path (batch divisible by the tile).
    y32e = jax.block_until_ready(fwd32(x[:192]))
    y_ref32e = mlp_reference(params, x[:192], jnp.float32)
    assert jnp.allclose(y32e, y_ref32e, atol=2e-2, rtol=2e-2), "f32 even-tile mismatch"

    # 2) bf16 MXU-input path (production default): check vs a bf16-matched reference.
    prep16 = prepare_params(params, IN)  # compute_dtype=jnp.bfloat16
    fwd16 = jax.jit(lambda xx: mlp_forward(prep16, xx, tile_m=64))
    y16 = jax.block_until_ready(fwd16(x))
    y_ref16 = mlp_reference(params, x, jnp.bfloat16)
    assert y16.shape == (N, OUT)
    assert jnp.allclose(y16, y_ref16, atol=5e-2, rtol=5e-2), "bf16 mismatch vs reference"

    print("KERNEL_OK")
</pallas_src>

<mosaic_0001>
module attributes {stable_mosaic.version = 11 : i64} {
  func.func @kernel(%arg0: i32, %arg1: memref<64x128xf32, #tpu.memory_space<vmem>>, %arg2: memref<128x128xf32, #tpu.memory_space<vmem>>, %arg3: memref<1x128xf32, #tpu.memory_space<vmem>>, %arg4: memref<64x128xf32, #tpu.memory_space<vmem>>, %arg5: memref<1x2x128xf32, #tpu.memory_space<vmem>>) attributes {dimension_semantics = [#tpu.dimension_semantics<parallel>], iteration_bounds = array<i64: 4>, scalar_prefetch = 0 : i64, scratch_operands = 0 : i64, tpu.core_type = #tpu.core_type<tc>, window_params = [{transform_indices = @transform_0, window_bounds = array<i64: 64, 128>}, {pipeline_mode = #tpu.pipeline_mode<synchronous>, transform_indices = @transform_1, window_bounds = array<i64: 128, 128>}, {pipeline_mode = #tpu.pipeline_mode<synchronous>, transform_indices = @transform_2, window_bounds = array<i64: 1, 128>}, {transform_indices = @transform_3, window_bounds = array<i64: 64, 128>}, {transform_indices = @transform_4, window_bounds = array<i64: 1, 2, 128>}]} {
    %c0 = arith.constant 0 : index
    %c0_0 = arith.constant 0 : index
    %0 = vector.load %arg1[%c0, %c0_0] : memref<64x128xf32, #tpu.memory_space<vmem>>, vector<64x128xf32>
    %c0_1 = arith.constant 0 : index
    %c0_2 = arith.constant 0 : index
    %1 = vector.load %arg2[%c0_1, %c0_2] : memref<128x128xf32, #tpu.memory_space<vmem>>, vector<128x128xf32>
    %cst = arith.constant dense<0.000000e+00> : vector<64x128xf32>
    %2 = tpu.matmul %0, %1, %cst {dimension_numbers = #tpu.dot_dimension_numbers<[1], [0], [0], [1], [0, 0, 1, 1], [], []>} : vector<64x128xf32>, vector<128x128xf32>, vector<64x128xf32> -> vector<64x128xf32>
    %c0_3 = arith.constant 0 : index
    %c0_4 = arith.constant 0 : index
    %3 = vector.load %arg3[%c0_3, %c0_4] : memref<1x128xf32, #tpu.memory_space<vmem>>, vector<1x128xf32>
    %4 = vector.broadcast %3 : vector<1x128xf32> to vector<64x128xf32>
    %5 = arith.addf %2, %4 : vector<64x128xf32>
    %cst_5 = arith.constant 0.000000e+00 : f32
    %6 = vector.broadcast %cst_5 : f32 to vector<64x128xf32>
    %7 = arith.maximumf %5, %6 : vector<64x128xf32>
    %c0_6 = arith.constant 0 : index
    %c0_7 = arith.constant 0 : index
    %8 = vector.load %arg4[%c0_6, %c0_7] : memref<64x128xf32, #tpu.memory_space<vmem>>, vector<64x128xf32>
    tpu.vector_store %arg4[%c0_6, %c0_7], %7 {strides = array<i32>} : memref<64x128xf32, #tpu.memory_space<vmem>>, vector<64x128xf32>,
    %c3_i32 = arith.constant 3 : i32
    %9 = arith.cmpi ne, %arg0, %c3_i32 : i32
    %10 = arith.extui %9 : i1 to i32
    %c0_i32 = arith.constant 0 : i32
    %11 = arith.cmpi ne, %10, %c0_i32 : i32
    scf.if %11 {
      %cst_10 = arith.constant dense<0.000000e+00> : vector<128xf32>
      %15 = vector.multi_reduction <add>, %7, %cst_10 [0] : vector<64x128xf32> to vector<128xf32>
      %16 = vector.shape_cast %15 : vector<128xf32> to vector<1x128xf32>
      %cst_11 = arith.constant 1.562500e-02 : f32
      %17 = vector.broadcast %cst_11 : f32 to vector<1x128xf32>
      %18 = arith.mulf %16, %17 : vector<1x128xf32>
      %19 = vector.broadcast %18 : vector<1x128xf32> to vector<64x128xf32>
      %20 = arith.subf %7, %19 : vector<64x128xf32>
      %21 = arith.mulf %20, %20 : vector<64x128xf32>
      %cst_12 = arith.constant dense<0.000000e+00> : vector<128xf32>
      %22 = vector.multi_reduction <add>, %21, %cst_12 [0] : vector<64x128xf32> to vector<128xf32>
      %23 = vector.shape_cast %22 : vector<128xf32> to vector<1x128xf32>
      %24 = tpu.concatenate %16, %23 in 0 : vector<1x128xf32>, vector<1x128xf32> -> vector<2x128xf32>
      %25 = vector.shape_cast %24 : vector<2x128xf32> to vector<1x2x128xf32>
      %c0_13 = arith.constant 0 : index
      %c0_14 = arith.constant 0 : index
      %c0_15 = arith.constant 0 : index
      %26 = vector.load %arg5[%c0_13, %c0_14, %c0_15] : memref<1x2x128xf32, #tpu.memory_space<vmem>>, vector<1x2x128xf32>
      tpu.vector_store %arg5[%c0_13, %c0_14, %c0_15], %25 {strides = array<i32>} : memref<1x2x128xf32, #tpu.memory_space<vmem>>, vector<1x2x128xf32>,
    } else {
    }
    %c3_i32_8 = arith.constant 3 : i32
    %12 = arith.cmpi eq, %arg0, %c3_i32_8 : i32
    %13 = arith.extui %12 : i1 to i32
    %c0_i32_9 = arith.constant 0 : i32
    %14 = arith.cmpi ne, %13, %c0_i32_9 : i32
    scf.if %14 {
      %15 = tpu.iota {dimensions = array<i32: 0>} : vector<64x1xi32>
      %c8_i32 = arith.constant 8 : i32
      %16 = vector.broadcast %c8_i32 : i32 to vector<64x1xi32>
      %17 = arith.cmpi slt, %15, %16 : vector<64x1xi32>
      %18 = arith.extui %17 : vector<64x1xi1> to vector<64x1xi32>
      %19 = arith.sitofp %18 : vector<64x1xi32> to vector<64x1xf32>
      %20 = vector.broadcast %19 : vector<64x1xf32> to vector<64x128xf32>
      %21 = arith.mulf %7, %20 : vector<64x128xf32>
      %cst_10 = arith.constant dense<0.000000e+00> : vector<128xf32>
      %22 = vector.multi_reduction <add>, %21, %cst_10 [0] : vector<64x128xf32> to vector<128xf32>
      %23 = vector.shape_cast %22 : vector<128xf32> to vector<1x128xf32>
      %cst_11 = arith.constant 1.250000e-01 : f32
      %24 = vector.broadcast %cst_11 : f32 to vector<1x128xf32>
      %25 = arith.mulf %23, %24 : vector<1x128xf32>
      %26 = vector.broadcast %25 : vector<1x128xf32> to vector<64x128xf32>
      %27 = arith.subf %7, %26 : vector<64x128xf32>
      %28 = vector.broadcast %19 : vector<64x1xf32> to vector<64x128xf32>
      %29 = arith.mulf %27, %28 : vector<64x128xf32>
      %30 = arith.mulf %29, %29 : vector<64x128xf32>
      %cst_12 = arith.constant dense<0.000000e+00> : vector<128xf32>
      %31 = vector.multi_reduction <add>, %30, %cst_12 [0] : vector<64x128xf32> to vector<128xf32>
      %32 = vector.shape_cast %31 : vector<128xf32> to vector<1x128xf32>
      %33 = tpu.concatenate %23, %32 in 0 : vector<1x128xf32>, vector<1x128xf32> -> vector<2x128xf32>
      %34 = vector.shape_cast %33 : vector<2x128xf32> to vector<1x2x128xf32>
      %c0_13 = arith.constant 0 : index
      %c0_14 = arith.constant 0 : index
      %c0_15 = arith.constant 0 : index
      %35 = vector.load %arg5[%c0_13, %c0_14, %c0_15] : memref<1x2x128xf32, #tpu.memory_space<vmem>>, vector<1x2x128xf32>
      tpu.vector_store %arg5[%c0_13, %c0_14, %c0_15], %34 {strides = array<i32>} : memref<1x2x128xf32, #tpu.memory_space<vmem>>, vector<1x2x128xf32>,
    } else {
    }
    return
  }
  func.func @transform_0(%arg0: i32) -> (i32, i32) {
    %c0_i32 = arith.constant 0 : i32
    %c0_i32_0 = arith.constant 0 : i32
    return %arg0, %c0_i32 : i32, i32
  }
  func.func @transform_1(%arg0: i32) -> (i32, i32) {
    %c0_i32 = arith.constant 0 : i32
    %c0_i32_0 = arith.constant 0 : i32
    %c0_i32_1 = arith.constant 0 : i32
    return %c0_i32, %c0_i32_0 : i32, i32
  }
  func.func @transform_2(%arg0: i32) -> (i32, i32) {
    %c0_i32 = arith.constant 0 : i32
    %c0_i32_0 = arith.constant 0 : i32
    %c0_i32_1 = arith.constant 0 : i32
    return %c0_i32, %c0_i32_0 : i32, i32
  }
  func.func @transform_3(%arg0: i32) -> (i32, i32) {
    %c0_i32 = arith.constant 0 : i32
    %c0_i32_0 = arith.constant 0 : i32
    return %arg0, %c0_i32 : i32, i32
  }
  func.func @transform_4(%arg0: i32) -> (i32, i32, i32) {
    %c0_i32 = arith.constant 0 : i32
    %c0_i32_0 = arith.constant 0 : i32
    %c0_i32_1 = arith.constant 0 : i32
    return %arg0, %c0_i32, %c0_i32_0 : i32, i32, i32
  }
}

module attributes {stable_mosaic.version = 11 : i64} {
  func.func @kernel(%arg0: i32, %arg1: memref<64x128xf32, #tpu.memory_space<vmem>>, %arg2: memref<1x128xf32, #tpu.memory_space<vmem>>, %arg3: memref<1x128xf32, #tpu.memory_space<vmem>>, %arg4: memref<128x128xf32, #tpu.memory_space<vmem>>, %arg5: memref<1x128xf32, #tpu.memory_space<vmem>>, %arg6: memref<64x128xf32, #tpu.memory_space<vmem>>) attributes {dimension_semantics = [#tpu.dimension_semantics<parallel>], iteration_bounds = array<i64: 4>, scalar_prefetch = 0 : i64, scratch_operands = 0 : i64, tpu.core_type = #tpu.core_type<tc>, window_params = [{transform_indices = @transform_0, window_bounds = array<i64: 64, 128>}, {pipeline_mode = #tpu.pipeline_mode<synchronous>, transform_indices = @transform_1, window_bounds = array<i64: 1, 128>}, {pipeline_mode = #tpu.pipeline_mode<synchronous>, transform_indices = @transform_2, window_bounds = array<i64: 1, 128>}, {pipeline_mode = #tpu.pipeline_mode<synchronous>, transform_indices = @transform_3, window_bounds = array<i64: 128, 128>}, {pipeline_mode = #tpu.pipeline_mode<synchronous>, transform_indices = @transform_4, window_bounds = array<i64: 1, 128>}, {transform_indices = @transform_5, window_bounds = array<i64: 64, 128>}]} {
    %c0 = arith.constant 0 : index
    %c0_0 = arith.constant 0 : index
    %0 = vector.load %arg1[%c0, %c0_0] : memref<64x128xf32, #tpu.memory_space<vmem>>, vector<64x128xf32>
    %c0_1 = arith.constant 0 : index
    %c0_2 = arith.constant 0 : index
    %1 = vector.load %arg2[%c0_1, %c0_2] : memref<1x128xf32, #tpu.memory_space<vmem>>, vector<1x128xf32>
    %2 = vector.broadcast %1 : vector<1x128xf32> to vector<64x128xf32>
    %3 = arith.mulf %0, %2 : vector<64x128xf32>
    %c0_3 = arith.constant 0 : index
    %c0_4 = arith.constant 0 : index
    %4 = vector.load %arg3[%c0_3, %c0_4] : memref<1x128xf32, #tpu.memory_space<vmem>>, vector<1x128xf32>
    %5 = vector.broadcast %4 : vector<1x128xf32> to vector<64x128xf32>
    %6 = arith.addf %3, %5 : vector<64x128xf32>
    %c0_5 = arith.constant 0 : index
    %c0_6 = arith.constant 0 : index
    %7 = vector.load %arg4[%c0_5, %c0_6] : memref<128x128xf32, #tpu.memory_space<vmem>>, vector<128x128xf32>
    %cst = arith.constant dense<0.000000e+00> : vector<64x128xf32>
    %8 = tpu.matmul %6, %7, %cst {dimension_numbers = #tpu.dot_dimension_numbers<[1], [0], [0], [1], [0, 0, 1, 1], [], []>} : vector<64x128xf32>, vector<128x128xf32>, vector<64x128xf32> -> vector<64x128xf32>
    %c0_7 = arith.constant 0 : index
    %c0_8 = arith.constant 0 : index
    %9 = vector.load %arg5[%c0_7, %c0_8] : memref<1x128xf32, #tpu.memory_space<vmem>>, vector<1x128xf32>
    %10 = vector.broadcast %9 : vector<1x128xf32> to vector<64x128xf32>
    %11 = arith.addf %8, %10 : vector<64x128xf32>
    %c0_9 = arith.constant 0 : index
    %c0_10 = arith.constant 0 : index
    %12 = vector.load %arg6[%c0_9, %c0_10] : memref<64x128xf32, #tpu.memory_space<vmem>>, vector<64x128xf32>
    tpu.vector_store %arg6[%c0_9, %c0_10], %11 {strides = array<i32>} : memref<64x128xf32, #tpu.memory_space<vmem>>, vector<64x128xf32>,
    return
  }
  func.func @transform_0(%arg0: i32) -> (i32, i32) {
    %c0_i32 = arith.constant 0 : i32
    %c0_i32_0 = arith.constant 0 : i32
    return %arg0, %c0_i32 : i32, i32
  }
  func.func @transform_1(%arg0: i32) -> (i32, i32) {
    %c0_i32 = arith.constant 0 : i32
    %c0_i32_0 = arith.constant 0 : i32
    %c0_i32_1 = arith.constant 0 : i32
    return %c0_i32, %c0_i32_0 : i32, i32
  }
  func.func @transform_2(%arg0: i32) -> (i32, i32) {
    %c0_i32 = arith.constant 0 : i32
    %c0_i32_0 = arith.constant 0 : i32
    %c0_i32_1 = arith.constant 0 : i32
    return %c0_i32, %c0_i32_0 : i32, i32
  }
  func.func @transform_3(%arg0: i32) -> (i32, i32) {
    %c0_i32 = arith.constant 0 : i32
    %c0_i32_0 = arith.constant 0 : i32
    %c0_i32_1 = arith.constant 0 : i32
    return %c0_i32, %c0_i32_0 : i32, i32
  }
  func.func @transform_4(%arg0: i32) -> (i32, i32) {
    %c0_i32 = arith.constant 0 : i32
    %c0_i32_0 = arith.constant 0 : i32
    %c0_i32_1 = arith.constant 0 : i32
    return %c0_i32, %c0_i32_0 : i32, i32
  }
  func.func @transform_5(%arg0: i32) -> (i32, i32) {
    %c0_i32 = arith.constant 0 : i32
    %c0_i32_0 = arith.constant 0 : i32
    return %arg0, %c0_i32 : i32, i32
  }
}

module attributes {stable_mosaic.version = 11 : i64} {
  func.func @kernel(%arg0: i32, %arg1: memref<64x128xf32, #tpu.memory_space<vmem>>, %arg2: memref<1x128xf32, #tpu.memory_space<vmem>>, %arg3: memref<1x128xf32, #tpu.memory_space<vmem>>, %arg4: memref<128x128xf32, #tpu.memory_space<vmem>>, %arg5: memref<1x128xf32, #tpu.memory_space<vmem>>, %arg6: memref<64x128xf32, #tpu.memory_space<vmem>>, %arg7: memref<1x2x128xf32, #tpu.memory_space<vmem>>) attributes {dimension_semantics = [#tpu.dimension_semantics<parallel>], iteration_bounds = array<i64: 4>, scalar_prefetch = 0 : i64, scratch_operands = 0 : i64, tpu.core_type = #tpu.core_type<tc>, window_params = [{transform_indices = @transform_0, window_bounds = array<i64: 64, 128>}, {pipeline_mode = #tpu.pipeline_mode<synchronous>, transform_indices = @transform_1, window_bounds = array<i64: 1, 128>}, {pipeline_mode = #tpu.pipeline_mode<synchronous>, transform_indices = @transform_2, window_bounds = array<i64: 1, 128>}, {pipeline_mode = #tpu.pipeline_mode<synchronous>, transform_indices = @transform_3, window_bounds = array<i64: 128, 128>}, {pipeline_mode = #tpu.pipeline_mode<synchronous>, transform_indices = @transform_4, window_bounds = array<i64: 1, 128>}, {transform_indices = @transform_5, window_bounds = array<i64: 64, 128>}, {transform_indices = @transform_6, window_bounds = array<i64: 1, 2, 128>}]} {
    %c0 = arith.constant 0 : index
    %c0_0 = arith.constant 0 : index
    %0 = vector.load %arg1[%c0, %c0_0] : memref<64x128xf32, #tpu.memory_space<vmem>>, vector<64x128xf32>
    %c0_1 = arith.constant 0 : index
    %c0_2 = arith.constant 0 : index
    %1 = vector.load %arg2[%c0_1, %c0_2] : memref<1x128xf32, #tpu.memory_space<vmem>>, vector<1x128xf32>
    %2 = vector.broadcast %1 : vector<1x128xf32> to vector<64x128xf32>
    %3 = arith.mulf %0, %2 : vector<64x128xf32>
    %c0_3 = arith.constant 0 : index
    %c0_4 = arith.constant 0 : index
    %4 = vector.load %arg3[%c0_3, %c0_4] : memref<1x128xf32, #tpu.memory_space<vmem>>, vector<1x128xf32>
    %5 = vector.broadcast %4 : vector<1x128xf32> to vector<64x128xf32>
    %6 = arith.addf %3, %5 : vector<64x128xf32>
    %c0_5 = arith.constant 0 : index
    %c0_6 = arith.constant 0 : index
    %7 = vector.load %arg4[%c0_5, %c0_6] : memref<128x128xf32, #tpu.memory_space<vmem>>, vector<128x128xf32>
    %cst = arith.constant dense<0.000000e+00> : vector<64x128xf32>
    %8 = tpu.matmul %6, %7, %cst {dimension_numbers = #tpu.dot_dimension_numbers<[1], [0], [0], [1], [0, 0, 1, 1], [], []>} : vector<64x128xf32>, vector<128x128xf32>, vector<64x128xf32> -> vector<64x128xf32>
    %c0_7 = arith.constant 0 : index
    %c0_8 = arith.constant 0 : index
    %9 = vector.load %arg5[%c0_7, %c0_8] : memref<1x128xf32, #tpu.memory_space<vmem>>, vector<1x128xf32>
    %10 = vector.broadcast %9 : vector<1x128xf32> to vector<64x128xf32>
    %11 = arith.addf %8, %10 : vector<64x128xf32>
    %cst_9 = arith.constant 0.000000e+00 : f32
    %12 = vector.broadcast %cst_9 : f32 to vector<64x128xf32>
    %13 = arith.maximumf %11, %12 : vector<64x128xf32>
    %c0_10 = arith.constant 0 : index
    %c0_11 = arith.constant 0 : index
    %14 = vector.load %arg6[%c0_10, %c0_11] : memref<64x128xf32, #tpu.memory_space<vmem>>, vector<64x128xf32>
    tpu.vector_store %arg6[%c0_10, %c0_11], %13 {strides = array<i32>} : memref<64x128xf32, #tpu.memory_space<vmem>>, vector<64x128xf32>,
    %c3_i32 = arith.constant 3 : i32
    %15 = arith.cmpi ne, %arg0, %c3_i32 : i32
    %16 = arith.extui %15 : i1 to i32
    %c0_i32 = arith.constant 0 : i32
    %17 = arith.cmpi ne, %16, %c0_i32 : i32
    scf.if %17 {
      %cst_14 = arith.constant dense<0.000000e+00> : vector<128xf32>
      %21 = vector.multi_reduction <add>, %13, %cst_14 [0] : vector<64x128xf32> to vector<128xf32>
      %22 = vector.shape_cast %21 : vector<128xf32> to vector<1x128xf32>
      %cst_15 = arith.constant 1.562500e-02 : f32
      %23 = vector.broadcast %cst_15 : f32 to vector<1x128xf32>
      %24 = arith.mulf %22, %23 : vector<1x128xf32>
      %25 = vector.broadcast %24 : vector<1x128xf32> to vector<64x128xf32>
      %26 = arith.subf %13, %25 : vector<64x128xf32>
      %27 = arith.mulf %26, %26 : vector<64x128xf32>
      %cst_16 = arith.constant dense<0.000000e+00> : vector<128xf32>
      %28 = vector.multi_reduction <add>, %27, %cst_16 [0] : vector<64x128xf32> to vector<128xf32>
      %29 = vector.shape_cast %28 : vector<128xf32> to vector<1x128xf32>
      %30 = tpu.concatenate %22, %29 in 0 : vector<1x128xf32>, vector<1x128xf32> -> vector<2x128xf32>
      %31 = vector.shape_cast %30 : vector<2x128xf32> to vector<1x2x128xf32>
      %c0_17 = arith.constant 0 : index
      %c0_18 = arith.constant 0 : index
      %c0_19 = arith.constant 0 : index
      %32 = vector.load %arg7[%c0_17, %c0_18, %c0_19] : memref<1x2x128xf32, #tpu.memory_space<vmem>>, vector<1x2x128xf32>
      tpu.vector_store %arg7[%c0_17, %c0_18, %c0_19], %31 {strides = array<i32>} : memref<1x2x128xf32, #tpu.memory_space<vmem>>, vector<1x2x128xf32>,
    } else {
    }
    %c3_i32_12 = arith.constant 3 : i32
    %18 = arith.cmpi eq, %arg0, %c3_i32_12 : i32
    %19 = arith.extui %18 : i1 to i32
    %c0_i32_13 = arith.constant 0 : i32
    %20 = arith.cmpi ne, %19, %c0_i32_13 : i32
    scf.if %20 {
      %21 = tpu.iota {dimensions = array<i32: 0>} : vector<64x1xi32>
      %c8_i32 = arith.constant 8 : i32
      %22 = vector.broadcast %c8_i32 : i32 to vector<64x1xi32>
      %23 = arith.cmpi slt, %21, %22 : vector<64x1xi32>
      %24 = arith.extui %23 : vector<64x1xi1> to vector<64x1xi32>
      %25 = arith.sitofp %24 : vector<64x1xi32> to vector<64x1xf32>
      %26 = vector.broadcast %25 : vector<64x1xf32> to vector<64x128xf32>
      %27 = arith.mulf %13, %26 : vector<64x128xf32>
      %cst_14 = arith.constant dense<0.000000e+00> : vector<128xf32>
      %28 = vector.multi_reduction <add>, %27, %cst_14 [0] : vector<64x128xf32> to vector<128xf32>
      %29 = vector.shape_cast %28 : vector<128xf32> to vector<1x128xf32>
      %cst_15 = arith.constant 1.250000e-01 : f32
      %30 = vector.broadcast %cst_15 : f32 to vector<1x128xf32>
      %31 = arith.mulf %29, %30 : vector<1x128xf32>
      %32 = vector.broadcast %31 : vector<1x128xf32> to vector<64x128xf32>
      %33 = arith.subf %13, %32 : vector<64x128xf32>
      %34 = vector.broadcast %25 : vector<64x1xf32> to vector<64x128xf32>
      %35 = arith.mulf %33, %34 : vector<64x128xf32>
      %36 = arith.mulf %35, %35 : vector<64x128xf32>
      %cst_16 = arith.constant dense<0.000000e+00> : vector<128xf32>
      %37 = vector.multi_reduction <add>, %36, %cst_16 [0] : vector<64x128xf32> to vector<128xf32>
      %38 = vector.shape_cast %37 : vector<128xf32> to vector<1x128xf32>
      %39 = tpu.concatenate %29, %38 in 0 : vector<1x128xf32>, vector<1x128xf32> -> vector<2x128xf32>
      %40 = vector.shape_cast %39 : vector<2x128xf32> to vector<1x2x128xf32>
      %c0_17 = arith.constant 0 : index
      %c0_18 = arith.constant 0 : index
      %c0_19 = arith.constant 0 : index
      %41 = vector.load %arg7[%c0_17, %c0_18, %c0_19] : memref<1x2x128xf32, #tpu.memory_space<vmem>>, vector<1x2x128xf32>
      tpu.vector_store %arg7[%c0_17, %c0_18, %c0_19], %40 {strides = array<i32>} : memref<1x2x128xf32, #tpu.memory_space<vmem>>, vector<1x2x128xf32>,
    } else {
    }
    return
  }
  func.func @transform_0(%arg0: i32) -> (i32, i32) {
    %c0_i32 = arith.constant 0 : i32
    %c0_i32_0 = arith.constant 0 : i32
    return %arg0, %c0_i32 : i32, i32
  }
  func.func @transform_1(%arg0: i32) -> (i32, i32) {
    %c0_i32 = arith.constant 0 : i32
    %c0_i32_0 = arith.constant 0 : i32
    %c0_i32_1 = arith.constant 0 : i32
    return %c0_i32, %c0_i32_0 : i32, i32
  }
  func.func @transform_2(%arg0: i32) -> (i32, i32) {
    %c0_i32 = arith.constant 0 : i32
    %c0_i32_0 = arith.constant 0 : i32
    %c0_i32_1 = arith.constant 0 : i32
    return %c0_i32, %c0_i32_0 : i32, i32
  }
  func.func @transform_3(%arg0: i32) -> (i32, i32) {
    %c0_i32 = arith.constant 0 : i32
    %c0_i32_0 = arith.constant 0 : i32
    %c0_i32_1 = arith.constant 0 : i32
    return %c0_i32, %c0_i32_0 : i32, i32
  }
  func.func @transform_4(%arg0: i32) -> (i32, i32) {
    %c0_i32 = arith.constant 0 : i32
    %c0_i32_0 = arith.constant 0 : i32
    %c0_i32_1 = arith.constant 0 : i32
    return %c0_i32, %c0_i32_0 : i32, i32
  }
  func.func @transform_5(%arg0: i32) -> (i32, i32) {
    %c0_i32 = arith.constant 0 : i32
    %c0_i32_0 = arith.constant 0 : i32
    return %arg0, %c0_i32 : i32, i32
  }
  func.func @transform_6(%arg0: i32) -> (i32, i32, i32) {
    %c0_i32 = arith.constant 0 : i32
    %c0_i32_0 = arith.constant 0 : i32
    %c0_i32_1 = arith.constant 0 : i32
    return %arg0, %c0_i32, %c0_i32_0 : i32, i32, i32
  }
}

</mosaic_0001>

<llo_original>
// kernel: _lambda_.5
$region0: #{_lambda_.5}
  #allocation0 [shape = 'u32[]', space=smem, size = 0x4, offset = 0x4, fixed_abs, tag = 'smem constant byte address 0x4 - core index']
  #allocation1 [shape = 'u32[144,128]{1,0:T(1,128)}', space=vmem, size = 0x12000, scoped, tag = 'internal scratch']
  %s0 = inlined_call_operand.vmem [shape: f32[256,128], index: 0, kind: input, shape index: {}]
  %s1 = inlined_call_operand.vmem [shape: f32[1,128], index: 1, kind: input, shape index: {}]
  %s2 = inlined_call_operand.vmem [shape: f32[1,128], index: 2, kind: input, shape index: {}]
  %s3 = inlined_call_operand.vmem [shape: f32[128,128], index: 3, kind: input, shape index: {}]
  %s4 = inlined_call_operand.vmem [shape: f32[1,128], index: 4, kind: input, shape index: {}]
  %s5 = inlined_call_operand.vmem [shape: f32[256,128], index: 5, kind: output, shape index: {}]
  %s6 = sld [smem:[#allocation0]]
  $region53: #{_lambda_.5} parent=0
    _
  %s8 = ssub.s32 1, %s6
  %s9 = scalar_select 0, %s8, %s6
  loop: start=0, step=1, limit=6
  $region2: #{_lambda_.5} parent=0 // loop_pre_header
    _
  $region3: #{_lambda_.5} parent=0 // loop_header
    %s11 = sphi 0, %s15
    %p12 = scmp.ge.s32.totalorder %s11, 6
    %s21 = sphi 0, %s23
    %s24 = sphi 0, %s21
    %s25 = sphi 0, %s24
    %s41 = sphi 0, %s25
    %s45 = sphi 0, %s45
    %s47 = sphi 0, %s45
    %s48 = sphi 0, %s47
    %s62 = sphi 0, %s48
    %s66 = sphi 0, %s66
    %s68 = sphi 0, %s66
    %s69 = sphi 0, %s68
    %s83 = sphi 0, %s69
    %s87 = sphi 0, %s87
    %s89 = sphi 0, %s87
    %s90 = sphi 0, %s89
    %s104 = sphi 0, %s90
    %s108 = sphi 0, %s108
    %s110 = sphi 0, %s108
    %s111 = sphi 0, %s110
    %s125 = sphi 0, %s111
    %s131 = sphi 0, %s133
    %s134 = sphi 0, %s131
    %s135 = sphi 0, %s134
    %s151 = sphi 0, %s135
  $region4: #{_lambda_.5} parent=0 // loop_header_branch
    %14 = sbr.rel (%p12) target = $region8
  $region5: #{_lambda_.5} parent=0 // loop_body
    %s16 = ssub.s32 %s11, 1
    %s17 = ssub.s32 %s11, 2
    %s18 = sadd.s32 %s11, 1
    %s19 = ssub.s32 %s11, %s18
    %p20 = scmp.eq.s32.totalorder %s19, 0
    %s22 = sadd.s32 %s21, 1
    %s23 = scalar_select %p20, %s21, %s22
    %p26 = pneg %p20
    %p27 = scmp.eq.s32.totalorder %s11, 3
    %p28 = por %p26, %p27
    %p29 = scmp.ne.s32.totalorder %s21, %s24
    %p30 = scmp.eq.s32.totalorder %s11, 0
    %p31 = por %p29, %p30
    %p32 = scmp.ne.s32.totalorder %s21, %s24
    %p33 = scmp.eq.s32.totalorder %s16, 3
    %p34 = por %p32, %p33
    %p35 = scmp.ne.s32.totalorder %s24, %s25
    %p36 = scmp.eq.s32.totalorder %s16, 0
    %p37 = por %p35, %p36
    %p38 = scmp.ne.s32.totalorder %s24, %s25
    %p39 = scmp.eq.s32.totalorder %s17, 3
    %p40 = por %p38, %p39
    %p42 = scmp.ne.s32.totalorder %s25, %s41
    %p43 = scmp.eq.s32.totalorder %s17, 0
    %p44 = por %p42, %p43
    %s46 = sadd.s32 %s45, 1
    %p49 = scmp.eq.s32.totalorder %s11, 3
    %p50 = scmp.ne.s32.totalorder %s45, %s47
    %p51 = scmp.eq.s32.totalorder %s11, 0
    %p52 = por %p50, %p51
    %p53 = scmp.ne.s32.totalorder %s45, %s47
    %p54 = scmp.eq.s32.totalorder %s16, 3
    %p55 = por %p53, %p54
    %p56 = scmp.ne.s32.totalorder %s47, %s48
    %p57 = scmp.eq.s32.totalorder %s16, 0
    %p58 = por %p56, %p57
    %p59 = scmp.ne.s32.totalorder %s47, %s48
    %p60 = scmp.eq.s32.totalorder %s17, 3
    %p61 = por %p59, %p60
    %p63 = scmp.ne.s32.totalorder %s48, %s62
    %p64 = scmp.eq.s32.totalorder %s17, 0
    %p65 = por %p63, %p64
    %s67 = sadd.s32 %s66, 1
    %p70 = scmp.eq.s32.totalorder %s11, 3
    %p71 = scmp.ne.s32.totalorder %s66, %s68
    %p72 = scmp.eq.s32.totalorder %s11, 0
    %p73 = por %p71, %p72
    %p74 = scmp.ne.s32.totalorder %s66, %s68
    %p75 = scmp.eq.s32.totalorder %s16, 3
    %p76 = por %p74, %p75
    %p77 = scmp.ne.s32.totalorder %s68, %s69
    %p78 = scmp.eq.s32.totalorder %s16, 0
    %p79 = por %p77, %p78
    %p80 = scmp.ne.s32.totalorder %s68, %s69
    %p81 = scmp.eq.s32.totalorder %s17, 3
    %p82 = por %p80, %p81
    %p84 = scmp.ne.s32.totalorder %s69, %s83
    %p85 = scmp.eq.s32.totalorder %s17, 0
    %p86 = por %p84, %p85
    %s88 = sadd.s32 %s87, 1
    %p91 = scmp.eq.s32.totalorder %s11, 3
    %p92 = scmp.ne.s32.totalorder %s87, %s89
    %p93 = scmp.eq.s32.totalorder %s11, 0
    %p94 = por %p92, %p93
    %p95 = scmp.ne.s32.totalorder %s87, %s89
    %p96 = scmp.eq.s32.totalorder %s16, 3
    %p97 = por %p95, %p96
    %p98 = scmp.ne.s32.totalorder %s89, %s90
    %p99 = scmp.eq.s32.totalorder %s16, 0
    %p100 = por %p98, %p99
    %p101 = scmp.ne.s32.totalorder %s89, %s90
    %p102 = scmp.eq.s32.totalorder %s17, 3
    %p103 = por %p101, %p102
    %p105 = scmp.ne.s32.totalorder %s90, %s104
    %p106 = scmp.eq.s32.totalorder %s17, 0
    %p107 = por %p105, %p106
    %s109 = sadd.s32 %s108, 1
    %p112 = scmp.eq.s32.totalorder %s11, 3
    %p113 = scmp.ne.s32.totalorder %s108, %s110
    %p114 = scmp.eq.s32.totalorder %s11, 0
    %p115 = por %p113, %p114
    %p116 = scmp.ne.s32.totalorder %s108, %s110
    %p117 = scmp.eq.s32.totalorder %s16, 3
    %p118 = por %p116, %p117
    %p119 = scmp.ne.s32.totalorder %s110, %s111
    %p120 = scmp.eq.s32.totalorder %s16, 0
    %p121 = por %p119, %p120
    %p122 = scmp.ne.s32.totalorder %s110, %s111
    %p123 = scmp.eq.s32.totalorder %s17, 3
    %p124 = por %p122, %p123
    %p126 = scmp.ne.s32.totalorder %s111, %s125
    %p127 = scmp.eq.s32.totalorder %s17, 0
    %p128 = por %p126, %p127
    %s129 = ssub.s32 %s11, %s18
    %p130 = scmp.eq.s32.totalorder %s129, 0
    %s132 = sadd.s32 %s131, 1
    %s133 = scalar_select %p130, %s131, %s132
    %p136 = pneg %p130
    %p137 = scmp.eq.s32.totalorder %s11, 3
    %p138 = por %p136, %p137
    %p139 = scmp.ne.s32.totalorder %s131, %s134
    %p140 = scmp.eq.s32.totalorder %s11, 0
    %p141 = por %p139, %p140
    %p142 = scmp.ne.s32.totalorder %s131, %s134
    %p143 = scmp.eq.s32.totalorder %s16, 3
    %p144 = por %p142, %p143
    %p145 = scmp.ne.s32.totalorder %s134, %s135
    %p146 = scmp.eq.s32.totalorder %s16, 0
    %p147 = por %p145, %p146
    %p148 = scmp.ne.s32.totalorder %s134, %s135
    %p149 = scmp.eq.s32.totalorder %s17, 3
    %p150 = por %p148, %p149
    %p152 = scmp.ne.s32.totalorder %s135, %s151
    %p153 = scmp.eq.s32.totalorder %s17, 0
    %p154 = por %p152, %p153
    %p155 = scmp.le.s32.totalorder 1, %s11
    %p156 = scmp.lt.s32.totalorder %s11, 5
    %p157 = pnand %p155, %p156
    %p158 = pneg %p157
    // Predicated region
    $region9: #{_lambda_.5} parent=5 // pred_check
      _
    $region10: #{_lambda_.5} parent=5 // pred_check_branch
      %160 = sbr.rel (%p157) target = $region12
    $region11: #{_lambda_.5} parent=5 // pred_region
      %s161 = ssub.s32 %s11, 1
      // Predicated region
      $region13: #{_lambda_.5} parent=11 // pred_check
        %p162 = pneg %p58
      $region14: #{_lambda_.5} parent=11 // pred_check_branch
        %164 = sbr.rel (%p162) target = $region16
      $region15: #{_lambda_.5} parent=11 // pred_region
        _
      $region16: #{_lambda_.5} parent=11 // pred_fallthru
        _
      // Predicated region
      $region17: #{_lambda_.5} parent=11 // pred_check
        %p165 = pneg %p79
      $region18: #{_lambda_.5} parent=11 // pred_check_branch
        %167 = sbr.rel (%p165) target = $region20
      $region19: #{_lambda_.5} parent=11 // pred_region
        _
      $region20: #{_lambda_.5} parent=11 // pred_fallthru
        _
      // Predicated region
      $region21: #{_lambda_.5} parent=11 // pred_check
        %p168 = pneg %p100
      $region22: #{_lambda_.5} parent=11 // pred_check_branch
        %170 = sbr.rel (%p168) target = $region24
      $region23: #{_lambda_.5} parent=11 // pred_region
        _
      $region24: #{_lambda_.5} parent=11 // pred_fallthru
        _
      // Predicated region
      $region25: #{_lambda_.5} parent=11 // pred_check
        %p171 = pneg %p121
      $region26: #{_lambda_.5} parent=11 // pred_check_branch
        %173 = sbr.rel (%p171) target = $region28
      $region27: #{_lambda_.5} parent=11 // pred_region
        _
      $region28: #{_lambda_.5} parent=11 // pred_fallthru
        _
    $region12: #{_lambda_.5} parent=5 // pred_fallthru
      _
    %p174 = scmp.lt.s32.totalorder %s11, 4
    // Predicated region
    $region29: #{_lambda_.5} parent=5 // pred_check
      %p175 = pneg %p174
    $region30: #{_lambda_.5} parent=5 // pred_check_branch
      %177 = sbr.rel (%p175) target = $region32
    $region31: #{_lambda_.5} parent=5 // pred_region
      // Predicated region
      $region33: #{_lambda_.5} parent=31 // pred_check
        %p178 = pneg %p31
      $region34: #{_lambda_.5} parent=31 // pred_check_branch
        %180 = sbr.rel (%p178) target = $region36
      $region35: #{_lambda_.5} parent=31 // pred_region
        %s181 = smul.u32 8, %s11
        %p182 = scmp.lt.s32.totalorder %s181, 31
        %s183 = scalar_select %p182, %s181, 31
        %s184 = smul.addr %s183, 8
        %s185 = scalar_lea.vmem %s0, %s184
        %s186 = smul.u32 8, %s11
      $region36: #{_lambda_.5} parent=31 // pred_fallthru
        _
    $region32: #{_lambda_.5} parent=5 // pred_fallthru
      _
    %p187 = scmp.le.s32.totalorder 1, %s11
    %p188 = scmp.lt.s32.totalorder %s11, 5
    %p189 = pnand %p187, %p188
    %p190 = pneg %p189
    // Predicated region
    $region37: #{_lambda_.5} parent=5 // pred_check
      _
    $region38: #{_lambda_.5} parent=5 // pred_check_branch
      %192 = sbr.rel (%p189) target = $region40
    $region39: #{_lambda_.5} parent=5 // pred_region
      %s193 = ssub.s32 %s11, 1
      %s194 = smul.u32 8, %s16
      %p195 = scmp.lt.s32.totalorder %s194, 31
      %s196 = scalar_select %p195, %s194, 31
      %s197 = smul.addr %s196, 8
      %s198 = scalar_lea.vmem %s0, %s197
      %p199 = pneg %p37
      %p200 = pneg %p34
      %p201 = pneg %p58
      %p202 = pneg %p55
      %p203 = pneg %p79
      %p204 = pneg %p76
      %p205 = pneg %p100
      %p206 = pneg %p97
      %p207 = pneg %p121
      %p208 = pneg %p118
      %p209 = pneg %p147
      %p210 = pneg %p144
      %s211 = smul.u32 8, %s16
      %p212 = scmp.lt.s32.totalorder %s211, 31
      %s213 = scalar_select %p212, %s211, 31
      %s214 = smul.addr %s213, 8
      %s215 = scalar_lea.vmem %s5, %s214
      %s216 = smul.u32 8, %s16
      %p217 = scmp.lt.s32.totalorder %s216, 31
      %s218 = scalar_select %p217, %s216, 31
      %s219 = smul.addr %s218, 8
      %s220 = scalar_lea.vmem %s0, %s219
      %s221 = smul.u32 8, %s16
      %s222 = smul.u32 8, %s16
      %p223 = scmp.lt.s32.totalorder %s222, 31
      %s224 = scalar_select %p223, %s222, 31
      %s225 = smul.addr %s224, 8
      %s226 = scalar_lea.vmem %s5, %s225
      %s227 = smul.u32 8, %s16
      %v228 = vld [vmem:[%s220] sm:$0xff]
      %v229 = vld [vmem:[%s220 + $0x8] sm:$0xff]
      %v230 = vld [vmem:[%s220 + $0x10] sm:$0xff]
      %v231 = vld [vmem:[%s220 + $0x18] sm:$0xff]
      %v232 = vld [vmem:[%s220 + $0x20] sm:$0xff]
      %v233 = vld [vmem:[%s220 + $0x28] sm:$0xff]
      %v234 = vld [vmem:[%s220 + $0x30] sm:$0xff]
      %v235 = vld [vmem:[%s220 + $0x38] sm:$0xff]
      %v236 = vld [vmem:[%s1] sm:$0x1]
      %v238 = vlaneseq
      %v239 = vshrl.u32 %v238, 7
      %v240 = vsub.s32 0, %v239
      %v241 = vrot.slane %v236, %v240
      %v243 = vmul.f32 %v228, %v241
      %v244 = vmul.f32 %v229, %v241
      %v245 = vmul.f32 %v230, %v241
      %v246 = vmul.f32 %v231, %v241
      %v247 = vmul.f32 %v232, %v241
      %v248 = vmul.f32 %v233, %v241
      %v249 = vmul.f32 %v234, %v241
      %v250 = vmul.f32 %v235, %v241
      %v251 = vld [vmem:[%s2] sm:$0x1]
      %v253 = vlaneseq
      %v254 = vshrl.u32 %v253, 7
      %v255 = vsub.s32 0, %v254
      %v256 = vrot.slane %v251, %v255
      %v258 = vadd.f32 %v243, %v256
      %v259 = vadd.f32 %v244, %v256
      %v260 = vadd.f32 %v245, %v256
      %v261 = vadd.f32 %v246, %v256
      %v262 = vadd.f32 %v247, %v256
      %v263 = vadd.f32 %v248, %v256
      %v264 = vadd.f32 %v249, %v256
      %v265 = vadd.f32 %v250, %v256
      %v266 = vld [vmem:[%s3] sm:$0xff]
      %v267 = vld [vmem:[%s3 + $0x8] sm:$0xff]
      %v268 = vld [vmem:[%s3 + $0x10] sm:$0xff]
      %v269 = vld [vmem:[%s3 + $0x18] sm:$0xff]
      %v270 = vld [vmem:[%s3 + $0x20] sm:$0xff]
      %v271 = vld [vmem:[%s3 + $0x28] sm:$0xff]
      %v272 = vld [vmem:[%s3 + $0x30] sm:$0xff]
      %v273 = vld [vmem:[%s3 + $0x38] sm:$0xff]
      %v274 = vld [vmem:[%s3 + $0x40] sm:$0xff]
      %v275 = vld [vmem:[%s3 + $0x48] sm:$0xff]
      %v276 = vld [vmem:[%s3 + $0x50] sm:$0xff]
      %v277 = vld [vmem:[%s3 + $0x58] sm:$0xff]
      %v278 = vld [vmem:[%s3 + $0x60] sm:$0xff]
      %v279 = vld [vmem:[%s3 + $0x68] sm:$0xff]
      %v280 = vld [vmem:[%s3 + $0x70] sm:$0xff]
      %v281 = vld [vmem:[%s3 + $0x78] sm:$0xff]
      %v282 = vld [vmem:[%s4] sm:$0x1]
      %v284 = vlaneseq
      %v285 = vshrl.u32 %v284, 7
      %v286 = vsub.s32 0, %v285
      %v287 = vrot.slane %v282, %v286
      %289 = vmatprep.subr.mxu0 0.0
      %290 = vmatpush1.msra.mxu0 %v281
      %291 = vmatprep.subr.mxu0 0.0
      %292 = vmatpush1.msra.mxu0 %v280
      %293 = vmatprep.subr.mxu0 0.0
      %294 = vmatpush1.msra.mxu0 %v279
      %295 = vmatprep.subr.mxu0 0.0
      %296 = vmatpush1.msra.mxu0 %v278
      %297 = vmatprep.subr.mxu0 0.0
      %298 = vmatpush1.msra.mxu0 %v277
      %299 = vmatprep.subr.mxu0 0.0
      %300 = vmatpush1.msra.mxu0 %v276
      %301 = vmatprep.subr.mxu0 0.0
      %302 = vmatpush1.msra.mxu0 %v275
      %303 = vmatprep.subr.mxu0 0.0
      %304 = vmatpush1.msra.mxu0 %v274
      %305 = vmatprep.subr.mxu0 0.0
      %306 = vmatpush1.msra.mxu0 %v273
      %307 = vmatprep.subr.mxu0 0.0
      %308 = vmatpush1.msra.mxu0 %v272
      %309 = vmatprep.subr.mxu0 0.0
      %310 = vmatpush1.msra.mxu0 %v271
      %311 = vmatprep.subr.mxu0 0.0
      %312 = vmatpush1.msra.mxu0 %v270
      %313 = vmatprep.subr.mxu0 0.0
      %314 = vmatpush1.msra.mxu0 %v269
      %315 = vmatprep.subr.mxu0 0.0
      %316 = vmatpush1.msra.mxu0 %v268
      %317 = vmatprep.subr.mxu0 0.0
      %318 = vmatpush1.msra.mxu0 %v267
      %319 = vmatprep.subr.mxu0 0.0
      %320 = vmatpush1.msra.mxu0 %v266
      %321 = vmatprep.subr.mxu0 0.0
      %322 = vmatpush2.msra.mxu0 0.0
      %323 = vmatprep.subr.mxu0 0.0
      %324 = vmatpush2.msra.mxu0 0.0
      %325 = vmatprep.subr.mxu0 0.0
      %326 = vmatpush2.msra.mxu0 0.0
      %327 = vmatprep.subr.mxu0 0.0
      %328 = vmatpush2.msra.mxu0 0.0
      %329 = vmatprep.subr.mxu0 0.0
      %330 = vmatpush2.msra.mxu0 0.0
      %331 = vmatprep.subr.mxu0 0.0
      %332 = vmatpush2.msra.mxu0 0.0
      %333 = vmatprep.subr.mxu0 0.0
      %334 = vmatpush2.msra.mxu0 0.0
      %335 = vmatprep.subr.mxu0 0.0
      %336 = vmatpush2.msra.mxu0 0.0
      %337 = vmatprep.subr.mxu0 0.0
      %338 = vmatpush2.msra.mxu0 0.0
      %339 = vmatprep.subr.mxu0 0.0
      %340 = vmatpush2.msra.mxu0 0.0
      %341 = vmatprep.subr.mxu0 0.0
      %342 = vmatpush2.msra.mxu0 0.0
      %343 = vmatprep.subr.mxu0 0.0
      %344 = vmatpush2.msra.mxu0 0.0
      %345 = vmatprep.subr.mxu0 0.0
      %346 = vmatpush2.msra.mxu0 0.0
      %347 = vmatprep.subr.mxu0 0.0
      %348 = vmatpush2.msra.mxu0 0.0
      %349 = vmatprep.subr.mxu0 0.0
      %350 = vmatpush2.msra.mxu0 0.0
      %351 = vmatprep.subr.mxu0 0.0
      %352 = vmatpush2.msra.mxu0 0.0
      %353 = vmatprep.mubr.f32.mxu0 0.0
      %354 = vmatmul.mubr.f32.gmra.mxu0 %v258
      %v355 = vpop.f32.mrf.mxu0
      %v356 = vadd.f32 %v287, %v355
      %v357 = vpop.f32.mrf.mxu0
      %358 = vmatprep.mubr.f32.mxu0 0.0
      %359 = vmatmul.mubr.f32.gmra.mxu0 %v259
      %v360 = vpop.f32.mrf.mxu0
      %v361 = vadd.f32 %v287, %v360
      %v362 = vpop.f32.mrf.mxu0
      %363 = vmatprep.mubr.f32.mxu0 0.0
      %364 = vmatmul.mubr.f32.gmra.mxu0 %v260
      %v365 = vpop.f32.mrf.mxu0
      %v366 = vadd.f32 %v287, %v365
      %v367 = vpop.f32.mrf.mxu0
      %368 = vmatprep.mubr.f32.mxu0 0.0
      %369 = vmatmul.mubr.f32.gmra.mxu0 %v261
      %v370 = vpop.f32.mrf.mxu0
      %v371 = vadd.f32 %v287, %v370
      %v372 = vpop.f32.mrf.mxu0
      %373 = vmatprep.mubr.f32.mxu0 0.0
      %374 = vmatmul.mubr.f32.gmra.mxu0 %v262
      %v375 = vpop.f32.mrf.mxu0
      %v376 = vadd.f32 %v287, %v375
      %v377 = vpop.f32.mrf.mxu0
      %378 = vmatprep.mubr.f32.mxu0 0.0
      %379 = vmatmul.mubr.f32.gmra.mxu0 %v263
      %v380 = vpop.f32.mrf.mxu0
      %v381 = vadd.f32 %v287, %v380
      %v382 = vpop.f32.mrf.mxu0
      %383 = vmatprep.mubr.f32.mxu0 0.0
      %384 = vmatmul.mubr.f32.gmra.mxu0 %v264
      %v385 = vpop.f32.mrf.mxu0
      %v386 = vadd.f32 %v287, %v385
      %v387 = vpop.f32.mrf.mxu0
      %388 = vmatprep.mubr.f32.mxu0 0.0
      %389 = vmatmul.mubr.f32.gmra.mxu0 %v265
      %v390 = vpop.f32.mrf.mxu0
      %v391 = vadd.f32 %v287, %v390
      %v392 = vpop.f32.mrf.mxu0
      %393 = vdwg.mxu0
      %394 = vst [vmem:[%s226] sm:$0xff] %v356
      %395 = vst [vmem:[%s226 + $0x8] sm:$0xff] %v361
      %396 = vst [vmem:[%s226 + $0x10] sm:$0xff] %v366
      %397 = vst [vmem:[%s226 + $0x18] sm:$0xff] %v371
      %398 = vst [vmem:[%s226 + $0x20] sm:$0xff] %v376
      %399 = vst [vmem:[%s226 + $0x28] sm:$0xff] %v381
      %400 = vst [vmem:[%s226 + $0x30] sm:$0xff] %v386
      %401 = vst [vmem:[%s226 + $0x38] sm:$0xff] %v391
      %s402 = smul.u32 8, %s16
      %p403 = scmp.lt.s32.totalorder %s402, 31
      %s404 = scalar_select %p403, %s402, 31
      %s405 = smul.addr %s404, 8
      %s406 = scalar_lea.vmem %s5, %s405
      // Predicated region
      $region41: #{_lambda_.5} parent=39 // pred_check
        %p407 = pneg %p144
      $region42: #{_lambda_.5} parent=39 // pred_check_branch
        %409 = sbr.rel (%p407) target = $region44
      $region43: #{_lambda_.5} parent=39 // pred_region
        %s410 = smul.u32 8, %s16
      $region44: #{_lambda_.5} parent=39 // pred_fallthru
        _
    $region40: #{_lambda_.5} parent=5 // pred_fallthru
      _
    %p411 = scmp.le.s32.totalorder 2, %s11
    // Predicated region
    $region45: #{_lambda_.5} parent=5 // pred_check
      %p412 = pneg %p411
    $region46: #{_lambda_.5} parent=5 // pred_check_branch
      %414 = sbr.rel (%p412) target = $region48
    $region47: #{_lambda_.5} parent=5 // pred_region
      %s415 = ssub.s32 %s11, 2
      // Predicated region
      $region49: #{_lambda_.5} parent=47 // pred_check
        %p416 = pneg %p150
      $region50: #{_lambda_.5} parent=47 // pred_check_branch
        %418 = sbr.rel (%p416) target = $region52
      $region51: #{_lambda_.5} parent=47 // pred_region
        %s419 = smul.u32 8, %s17
        %p420 = scmp.lt.s32.totalorder %s419, 31
        %s421 = scalar_select %p420, %s419, 31
        %s422 = smul.addr %s421, 8
        %s423 = scalar_lea.vmem %s5, %s422
      $region52: #{_lambda_.5} parent=47 // pred_fallthru
        _
    $region48: #{_lambda_.5} parent=5 // pred_fallthru
      _
  $region6: #{_lambda_.5} parent=0 // loop_footer
    %s15 = sadd.s32 1, %s11
  $region7: #{_lambda_.5} parent=0 // loop_footer_branch
    %10 = sbr.rel target = $region3
  $region8: #{_lambda_.5} parent=0 // loop_exit
    _

// kernel: _lambda_.3
$region0: #{_lambda_.3}
  #allocation0 [shape = 'u32[]', space=smem, size = 0x4, offset = 0x4, fixed_abs, tag = 'smem constant byte address 0x4 - core index']
  #allocation1 [shape = 'u32[144,128]{1,0:T(1,128)}', space=vmem, size = 0x12000, scoped, tag = 'internal scratch']
  %s0 = inlined_call_operand.vmem [shape: f32[256,128], index: 0, kind: input, shape index: {}]
  %s1 = inlined_call_operand.vmem [shape: f32[128,128], index: 1, kind: input, shape index: {}]
  %s2 = inlined_call_operand.vmem [shape: f32[1,128], index: 2, kind: input, shape index: {}]
  %s3 = inlined_call_operand.vmem [shape: f32[256,128], index: 3, kind: output, shape index: {0}]
  %s4 = inlined_call_operand.vmem [shape: f32[4,2,128], index: 4, kind: output, shape index: {1}]
  %5 = xla_tuple %s3, %s4
  %s6 = sld [smem:[#allocation0]]
  $region61: #{_lambda_.3} parent=0
    _
  %s8 = ssub.s32 1, %s6
  %s9 = scalar_select 0, %s8, %s6
  loop: start=0, step=1, limit=6
  $region2: #{_lambda_.3} parent=0 // loop_pre_header
    _
  $region3: #{_lambda_.3} parent=0 // loop_header
    %s11 = sphi 0, %s15
    %p12 = scmp.ge.s32.totalorder %s11, 6
    %s21 = sphi 0, %s23
    %s24 = sphi 0, %s21
    %s25 = sphi 0, %s24
    %s41 = sphi 0, %s25
    %s45 = sphi 0, %s45
    %s47 = sphi 0, %s45
    %s48 = sphi 0, %s47
    %s62 = sphi 0, %s48
    %s66 = sphi 0, %s66
    %s68 = sphi 0, %s66
    %s69 = sphi 0, %s68
    %s83 = sphi 0, %s69
    %s89 = sphi 0, %s91
    %s92 = sphi 0, %s89
    %s93 = sphi 0, %s92
    %s109 = sphi 0, %s93
    %s115 = sphi 0, %s117
    %s118 = sphi 0, %s115
    %s119 = sphi 0, %s118
    %s135 = sphi 0, %s119
  $region4: #{_lambda_.3} parent=0 // loop_header_branch
    %14 = sbr.rel (%p12) target = $region8
  $region5: #{_lambda_.3} parent=0 // loop_body
    %s16 = ssub.s32 %s11, 1
    %s17 = ssub.s32 %s11, 2
    %s18 = sadd.s32 %s11, 1
    %s19 = ssub.s32 %s11, %s18
    %p20 = scmp.eq.s32.totalorder %s19, 0
    %s22 = sadd.s32 %s21, 1
    %s23 = scalar_select %p20, %s21, %s22
    %p26 = pneg %p20
    %p27 = scmp.eq.s32.totalorder %s11, 3
    %p28 = por %p26, %p27
    %p29 = scmp.ne.s32.totalorder %s21, %s24
    %p30 = scmp.eq.s32.totalorder %s11, 0
    %p31 = por %p29, %p30
    %p32 = scmp.ne.s32.totalorder %s21, %s24
    %p33 = scmp.eq.s32.totalorder %s16, 3
    %p34 = por %p32, %p33
    %p35 = scmp.ne.s32.totalorder %s24, %s25
    %p36 = scmp.eq.s32.totalorder %s16, 0
    %p37 = por %p35, %p36
    %p38 = scmp.ne.s32.totalorder %s24, %s25
    %p39 = scmp.eq.s32.totalorder %s17, 3
    %p40 = por %p38, %p39
    %p42 = scmp.ne.s32.totalorder %s25, %s41
    %p43 = scmp.eq.s32.totalorder %s17, 0
    %p44 = por %p42, %p43
    %s46 = sadd.s32 %s45, 1
    %p49 = scmp.eq.s32.totalorder %s11, 3
    %p50 = scmp.ne.s32.totalorder %s45, %s47
    %p51 = scmp.eq.s32.totalorder %s11, 0
    %p52 = por %p50, %p51
    %p53 = scmp.ne.s32.totalorder %s45, %s47
    %p54 = scmp.eq.s32.totalorder %s16, 3
    %p55 = por %p53, %p54
    %p56 = scmp.ne.s32.totalorder %s47, %s48
    %p57 = scmp.eq.s32.totalorder %s16, 0
    %p58 = por %p56, %p57
    %p59 = scmp.ne.s32.totalorder %s47, %s48
    %p60 = scmp.eq.s32.totalorder %s17, 3
    %p61 = por %p59, %p60
    %p63 = scmp.ne.s32.totalorder %s48, %s62
    %p64 = scmp.eq.s32.totalorder %s17, 0
    %p65 = por %p63, %p64
    %s67 = sadd.s32 %s66, 1
    %p70 = scmp.eq.s32.totalorder %s11, 3
    %p71 = scmp.ne.s32.totalorder %s66, %s68
    %p72 = scmp.eq.s32.totalorder %s11, 0
    %p73 = por %p71, %p72
    %p74 = scmp.ne.s32.totalorder %s66, %s68
    %p75 = scmp.eq.s32.totalorder %s16, 3
    %p76 = por %p74, %p75
    %p77 = scmp.ne.s32.totalorder %s68, %s69
    %p78 = scmp.eq.s32.totalorder %s16, 0
    %p79 = por %p77, %p78
    %p80 = scmp.ne.s32.totalorder %s68, %s69
    %p81 = scmp.eq.s32.totalorder %s17, 3
    %p82 = por %p80, %p81
    %p84 = scmp.ne.s32.totalorder %s69, %s83
    %p85 = scmp.eq.s32.totalorder %s17, 0
    %p86 = por %p84, %p85
    %s87 = ssub.s32 %s11, %s18
    %p88 = scmp.eq.s32.totalorder %s87, 0
    %s90 = sadd.s32 %s89, 1
    %s91 = scalar_select %p88, %s89, %s90
    %p94 = pneg %p88
    %p95 = scmp.eq.s32.totalorder %s11, 3
    %p96 = por %p94, %p95
    %p97 = scmp.ne.s32.totalorder %s89, %s92
    %p98 = scmp.eq.s32.totalorder %s11, 0
    %p99 = por %p97, %p98
    %p100 = scmp.ne.s32.totalorder %s89, %s92
    %p101 = scmp.eq.s32.totalorder %s16, 3
    %p102 = por %p100, %p101
    %p103 = scmp.ne.s32.totalorder %s92, %s93
    %p104 = scmp.eq.s32.totalorder %s16, 0
    %p105 = por %p103, %p104
    %p106 = scmp.ne.s32.totalorder %s92, %s93
    %p107 = scmp.eq.s32.totalorder %s17, 3
    %p108 = por %p106, %p107
    %p110 = scmp.ne.s32.totalorder %s93, %s109
    %p111 = scmp.eq.s32.totalorder %s17, 0
    %p112 = por %p110, %p111
    %s113 = ssub.s32 %s11, %s18
    %p114 = scmp.eq.s32.totalorder %s113, 0
    %s116 = sadd.s32 %s115, 1
    %s117 = scalar_select %p114, %s115, %s116
    %p120 = pneg %p114
    %p121 = scmp.eq.s32.totalorder %s11, 3
    %p122 = por %p120, %p121
    %p123 = scmp.ne.s32.totalorder %s115, %s118
    %p124 = scmp.eq.s32.totalorder %s11, 0
    %p125 = por %p123, %p124
    %p126 = scmp.ne.s32.totalorder %s115, %s118
    %p127 = scmp.eq.s32.totalorder %s16, 3
    %p128 = por %p126, %p127
    %p129 = scmp.ne.s32.totalorder %s118, %s119
    %p130 = scmp.eq.s32.totalorder %s16, 0
    %p131 = por %p129, %p130
    %p132 = scmp.ne.s32.totalorder %s118, %s119
    %p133 = scmp.eq.s32.totalorder %s17, 3
    %p134 = por %p132, %p133
    %p136 = scmp.ne.s32.totalorder %s119, %s135
    %p137 = scmp.eq.s32.totalorder %s17, 0
    %p138 = por %p136, %p137
    %p139 = scmp.le.s32.totalorder 1, %s11
    %p140 = scmp.lt.s32.totalorder %s11, 5
    %p141 = pnand %p139, %p140
    %p142 = pneg %p141
    // Predicated region
    $region9: #{_lambda_.3} parent=5 // pred_check
      _
    $region10: #{_lambda_.3} parent=5 // pred_check_branch
      %144 = sbr.rel (%p141) target = $region12
    $region11: #{_lambda_.3} parent=5 // pred_region
      %s145 = ssub.s32 %s11, 1
      // Predicated region
      $region13: #{_lambda_.3} parent=11 // pred_check
        %p146 = pneg %p58
      $region14: #{_lambda_.3} parent=11 // pred_check_branch
        %148 = sbr.rel (%p146) target = $region16
      $region15: #{_lambda_.3} parent=11 // pred_region
        _
      $region16: #{_lambda_.3} parent=11 // pred_fallthru
        _
      // Predicated region
      $region17: #{_lambda_.3} parent=11 // pred_check
        %p149 = pneg %p79
      $region18: #{_lambda_.3} parent=11 // pred_check_branch
        %151 = sbr.rel (%p149) target = $region20
      $region19: #{_lambda_.3} parent=11 // pred_region
        _
      $region20: #{_lambda_.3} parent=11 // pred_fallthru
        _
    $region12: #{_lambda_.3} parent=5 // pred_fallthru
      _
    %p152 = scmp.lt.s32.totalorder %s11, 4
    // Predicated region
    $region21: #{_lambda_.3} parent=5 // pred_check
      %p153 = pneg %p152
    $region22: #{_lambda_.3} parent=5 // pred_check_branch
      %155 = sbr.rel (%p153) target = $region24
    $region23: #{_lambda_.3} parent=5 // pred_region
      // Predicated region
      $region25: #{_lambda_.3} parent=23 // pred_check
        %p156 = pneg %p31
      $region26: #{_lambda_.3} parent=23 // pred_check_branch
        %158 = sbr.rel (%p156) target = $region28
      $region27: #{_lambda_.3} parent=23 // pred_region
        %s159 = smul.u32 8, %s11
        %p160 = scmp.lt.s32.totalorder %s159, 31
        %s161 = scalar_select %p160, %s159, 31
        %s162 = smul.addr %s161, 8
        %s163 = scalar_lea.vmem %s0, %s162
        %s164 = smul.u32 8, %s11
      $region28: #{_lambda_.3} parent=23 // pred_fallthru
        _
    $region24: #{_lambda_.3} parent=5 // pred_fallthru
      _
    %p165 = scmp.le.s32.totalorder 1, %s11
    %p166 = scmp.lt.s32.totalorder %s11, 5
    %p167 = pnand %p165, %p166
    %p168 = pneg %p167
    // Predicated region
    $region29: #{_lambda_.3} parent=5 // pred_check
      _
    $region30: #{_lambda_.3} parent=5 // pred_check_branch
      %170 = sbr.rel (%p167) target = $region32
    $region31: #{_lambda_.3} parent=5 // pred_region
      %s171 = ssub.s32 %s11, 1
      %s172 = smul.u32 8, %s16
      %p173 = scmp.lt.s32.totalorder %s172, 31
      %s174 = scalar_select %p173, %s172, 31
      %s175 = smul.addr %s174, 8
      %s176 = scalar_lea.vmem %s0, %s175
      %p177 = pneg %p37
      %p178 = pneg %p34
      %p179 = pneg %p58
      %p180 = pneg %p55
      %p181 = pneg %p79
      %p182 = pneg %p76
      %p183 = pneg %p105
      %p184 = pneg %p102
      %s185 = smul.u32 8, %s16
      %p186 = scmp.lt.s32.totalorder %s185, 31
      %s187 = scalar_select %p186, %s185, 31
      %s188 = smul.addr %s187, 8
      %s189 = scalar_lea.vmem %s3, %s188
      %p190 = pneg %p131
      %p191 = pneg %p128
      %p192 = scmp.lt.s32.totalorder %s16, 3
      %s193 = scalar_select %p192, %s16, 3
      %s194 = smul.addr %s193, 2
      %s195 = scalar_lea.vmem %s4, %s194
      %s196 = smul.u32 8, %s16
      %p197 = scmp.lt.s32.totalorder %s196, 31
      %s198 = scalar_select %p197, %s196, 31
      %s199 = smul.addr %s198, 8
      %s200 = scalar_lea.vmem %s0, %s199
      %s201 = smul.u32 8, %s16
      %s202 = smul.u32 8, %s16
      %p203 = scmp.lt.s32.totalorder %s202, 31
      %s204 = scalar_select %p203, %s202, 31
      %s205 = smul.addr %s204, 8
      %s206 = scalar_lea.vmem %s3, %s205
      %s207 = smul.u32 8, %s16
      %p208 = scmp.lt.s32.totalorder %s16, 3
      %s209 = scalar_select %p208, %s16, 3
      %s210 = smul.addr %s209, 2
      %s211 = scalar_lea.vmem %s4, %s210
      %v212 = vld [vmem:[%s200] sm:$0xff]
      %v213 = vld [vmem:[%s200 + $0x8] sm:$0xff]
      %v214 = vld [vmem:[%s200 + $0x10] sm:$0xff]
      %v215 = vld [vmem:[%s200 + $0x18] sm:$0xff]
      %v216 = vld [vmem:[%s200 + $0x20] sm:$0xff]
      %v217 = vld [vmem:[%s200 + $0x28] sm:$0xff]
      %v218 = vld [vmem:[%s200 + $0x30] sm:$0xff]
      %v219 = vld [vmem:[%s200 + $0x38] sm:$0xff]
      %v220 = vld [vmem:[%s1] sm:$0xff]
      %v221 = vld [vmem:[%s1 + $0x8] sm:$0xff]
      %v222 = vld [vmem:[%s1 + $0x10] sm:$0xff]
      %v223 = vld [vmem:[%s1 + $0x18] sm:$0xff]
      %v224 = vld [vmem:[%s1 + $0x20] sm:$0xff]
      %v225 = vld [vmem:[%s1 + $0x28] sm:$0xff]
      %v226 = vld [vmem:[%s1 + $0x30] sm:$0xff]
      %v227 = vld [vmem:[%s1 + $0x38] sm:$0xff]
      %v228 = vld [vmem:[%s1 + $0x40] sm:$0xff]
      %v229 = vld [vmem:[%s1 + $0x48] sm:$0xff]
      %v230 = vld [vmem:[%s1 + $0x50] sm:$0xff]
      %v231 = vld [vmem:[%s1 + $0x58] sm:$0xff]
      %v232 = vld [vmem:[%s1 + $0x60] sm:$0xff]
      %v233 = vld [vmem:[%s1 + $0x68] sm:$0xff]
      %v234 = vld [vmem:[%s1 + $0x70] sm:$0xff]
      %v235 = vld [vmem:[%s1 + $0x78] sm:$0xff]
      %v236 = vld [vmem:[%s2] sm:$0x1]
      %v238 = vlaneseq
      %v239 = vshrl.u32 %v238, 7
      %v240 = vsub.s32 0, %v239
      %v241 = vrot.slane %v236, %v240
      %243 = vmatprep.subr.mxu0 0.0
      %244 = vmatpush1.msra.mxu0 %v235
      %245 = vmatprep.subr.mxu0 0.0
      %246 = vmatpush1.msra.mxu0 %v234
      %247 = vmatprep.subr.mxu0 0.0
      %248 = vmatpush1.msra.mxu0 %v233
      %249 = vmatprep.subr.mxu0 0.0
      %250 = vmatpush1.msra.mxu0 %v232
      %251 = vmatprep.subr.mxu0 0.0
      %252 = vmatpush1.msra.mxu0 %v231
      %253 = vmatprep.subr.mxu0 0.0
      %254 = vmatpush1.msra.mxu0 %v230
      %255 = vmatprep.subr.mxu0 0.0
      %256 = vmatpush1.msra.mxu0 %v229
      %257 = vmatprep.subr.mxu0 0.0
      %258 = vmatpush1.msra.mxu0 %v228
      %259 = vmatprep.subr.mxu0 0.0
      %260 = vmatpush1.msra.mxu0 %v227
      %261 = vmatprep.subr.mxu0 0.0
      %262 = vmatpush1.msra.mxu0 %v226
      %263 = vmatprep.subr.mxu0 0.0
      %264 = vmatpush1.msra.mxu0 %v225
      %265 = vmatprep.subr.mxu0 0.0
      %266 = vmatpush1.msra.mxu0 %v224
      %267 = vmatprep.subr.mxu0 0.0
      %268 = vmatpush1.msra.mxu0 %v223
      %269 = vmatprep.subr.mxu0 0.0
      %270 = vmatpush1.msra.mxu0 %v222
      %271 = vmatprep.subr.mxu0 0.0
      %272 = vmatpush1.msra.mxu0 %v221
      %273 = vmatprep.subr.mxu0 0.0
      %274 = vmatpush1.msra.mxu0 %v220
      %275 = vmatprep.subr.mxu0 0.0
      %276 = vmatpush2.msra.mxu0 0.0
      %277 = vmatprep.subr.mxu0 0.0
      %278 = vmatpush2.msra.mxu0 0.0
      %279 = vmatprep.subr.mxu0 0.0
      %280 = vmatpush2.msra.mxu0 0.0
      %281 = vmatprep.subr.mxu0 0.0
      %282 = vmatpush2.msra.mxu0 0.0
      %283 = vmatprep.subr.mxu0 0.0
      %284 = vmatpush2.msra.mxu0 0.0
      %285 = vmatprep.subr.mxu0 0.0
      %286 = vmatpush2.msra.mxu0 0.0
      %287 = vmatprep.subr.mxu0 0.0
      %288 = vmatpush2.msra.mxu0 0.0
      %289 = vmatprep.subr.mxu0 0.0
      %290 = vmatpush2.msra.mxu0 0.0
      %291 = vmatprep.subr.mxu0 0.0
      %292 = vmatpush2.msra.mxu0 0.0
      %293 = vmatprep.subr.mxu0 0.0
      %294 = vmatpush2.msra.mxu0 0.0
      %295 = vmatprep.subr.mxu0 0.0
      %296 = vmatpush2.msra.mxu0 0.0
      %297 = vmatprep.subr.mxu0 0.0
      %298 = vmatpush2.msra.mxu0 0.0
      %299 = vmatprep.subr.mxu0 0.0
      %300 = vmatpush2.msra.mxu0 0.0
      %301 = vmatprep.subr.mxu0 0.0
      %302 = vmatpush2.msra.mxu0 0.0
      %303 = vmatprep.subr.mxu0 0.0
      %304 = vmatpush2.msra.mxu0 0.0
      %305 = vmatprep.subr.mxu0 0.0
      %306 = vmatpush2.msra.mxu0 0.0
      %307 = vmatprep.mubr.f32.mxu0 0.0
      %308 = vmatmul.mubr.f32.gmra.mxu0 %v212
      %v309 = vpop.f32.mrf.mxu0
      %v310 = vadd.f32 %v241, %v309
      %v311 = vpop.f32.mrf.mxu0
      %312 = vmatprep.mubr.f32.mxu0 0.0
      %313 = vmatmul.mubr.f32.gmra.mxu0 %v213
      %v314 = vpop.f32.mrf.mxu0
      %v315 = vadd.f32 %v241, %v314
      %v316 = vpop.f32.mrf.mxu0
      %317 = vmatprep.mubr.f32.mxu0 0.0
      %318 = vmatmul.mubr.f32.gmra.mxu0 %v214
      %v319 = vpop.f32.mrf.mxu0
      %v320 = vadd.f32 %v241, %v319
      %v321 = vpop.f32.mrf.mxu0
      %322 = vmatprep.mubr.f32.mxu0 0.0
      %323 = vmatmul.mubr.f32.gmra.mxu0 %v215
      %v324 = vpop.f32.mrf.mxu0
      %v325 = vadd.f32 %v241, %v324
      %v326 = vpop.f32.mrf.mxu0
      %327 = vmatprep.mubr.f32.mxu0 0.0
      %328 = vmatmul.mubr.f32.gmra.mxu0 %v216
      %v329 = vpop.f32.mrf.mxu0
      %v330 = vadd.f32 %v241, %v329
      %v331 = vpop.f32.mrf.mxu0
      %332 = vmatprep.mubr.f32.mxu0 0.0
      %333 = vmatmul.mubr.f32.gmra.mxu0 %v217
      %v334 = vpop.f32.mrf.mxu0
      %v335 = vadd.f32 %v241, %v334
      %v336 = vpop.f32.mrf.mxu0
      %337 = vmatprep.mubr.f32.mxu0 0.0
      %338 = vmatmul.mubr.f32.gmra.mxu0 %v218
      %v339 = vpop.f32.mrf.mxu0
      %v340 = vadd.f32 %v241, %v339
      %v341 = vpop.f32.mrf.mxu0
      %342 = vmatprep.mubr.f32.mxu0 0.0
      %343 = vmatmul.mubr.f32.gmra.mxu0 %v219
      %v344 = vpop.f32.mrf.mxu0
      %v345 = vadd.f32 %v241, %v344
      %v346 = vpop.f32.mrf.mxu0
      %347 = vdwg.mxu0
      %v348 = vmax.f32 %v310, 0.0
      %v349 = vmax.f32 %v315, 0.0
      %v350 = vmax.f32 %v320, 0.0
      %v351 = vmax.f32 %v325, 0.0
      %v352 = vmax.f32 %v330, 0.0
      %v353 = vmax.f32 %v335, 0.0
      %v354 = vmax.f32 %v340, 0.0
      %v355 = vmax.f32 %v345, 0.0
      %356 = vst [vmem:[%s206] sm:$0xff] %v348
      %357 = vst [vmem:[%s206 + $0x8] sm:$0xff] %v349
      %358 = vst [vmem:[%s206 + $0x10] sm:$0xff] %v350
      %359 = vst [vmem:[%s206 + $0x18] sm:$0xff] %v351
      %360 = vst [vmem:[%s206 + $0x20] sm:$0xff] %v352
      %361 = vst [vmem:[%s206 + $0x28] sm:$0xff] %v353
      %362 = vst [vmem:[%s206 + $0x30] sm:$0xff] %v354
      %363 = vst [vmem:[%s206 + $0x38] sm:$0xff] %v355
      %p364 = scmp.ne.s32.totalorder %s16, 3
      // Predicated region
      $region33: #{_lambda_.3} parent=31 // pred_check
        %p365 = pneg %p364
      $region34: #{_lambda_.3} parent=31 // pred_check_branch
        %367 = sbr.rel (%p365) target = $region36
      $region35: #{_lambda_.3} parent=31 // pred_region
        %v368 = vadd.f32 %v348, %v349
        %v369 = vadd.f32 %v368, %v350
        %v370 = vadd.f32 %v369, %v351
        %v371 = vadd.f32 %v370, %v352
        %v372 = vadd.f32 %v371, %v353
        %v373 = vadd.f32 %v372, %v354
        %v374 = vadd.f32 %v373, %v355
        %v375 = vrot.slane %v374, 4
        %v376 = vadd.f32 %v374, %v375
        %v377 = vrot.slane %v376, 2
        %v378 = vadd.f32 %v376, %v377
        %v379 = vrot.slane %v378, 1
        %v380 = vadd.f32 %v378, %v379
        %v381 = vmul.f32 %v380, 0.015625
        %v382 = vsub.f32 %v348, %v381
        %v383 = vsub.f32 %v349, %v381
        %v384 = vsub.f32 %v350, %v381
        %v385 = vsub.f32 %v351, %v381
        %v386 = vsub.f32 %v352, %v381
        %v387 = vsub.f32 %v353, %v381
        %v388 = vsub.f32 %v354, %v381
        %v389 = vsub.f32 %v355, %v381
        %v390 = vmul.f32 %v382, %v382
        %v391 = vmul.f32 %v383, %v383
        %v392 = vmul.f32 %v384, %v384
        %v393 = vmul.f32 %v385, %v385
        %v394 = vmul.f32 %v386, %v386
        %v395 = vmul.f32 %v387, %v387
        %v396 = vmul.f32 %v388, %v388
        %v397 = vmul.f32 %v389, %v389
        %v398 = vadd.f32 %v390, %v391
        %v399 = vadd.f32 %v398, %v392
        %v400 = vadd.f32 %v399, %v393
        %v401 = vadd.f32 %v400, %v394
        %v402 = vadd.f32 %v401, %v395
        %v403 = vadd.f32 %v402, %v396
        %v404 = vadd.f32 %v403, %v397
        %v405 = vrot.slane %v404, 4
        %v406 = vadd.f32 %v404, %v405
        %v407 = vrot.slane %v406, 2
        %v408 = vadd.f32 %v406, %v407
        %v409 = vrot.slane %v408, 1
        %v410 = vadd.f32 %v408, %v409
        %vm411 = vcmask 1040384
        %v412 = vsel %vm411, %v380, %v410
        %413 = vst [vmem:[%s211] sm:$0x3] %v412
      $region36: #{_lambda_.3} parent=31 // pred_fallthru
        _
      %p414 = scmp.eq.s32.totalorder %s16, 3
      // Predicated region
      $region37: #{_lambda_.3} parent=31 // pred_check
        %p415 = pneg %p414
      $region38: #{_lambda_.3} parent=31 // pred_check_branch
        %417 = sbr.rel (%p415) target = $region40
      $region39: #{_lambda_.3} parent=31 // pred_region
        %v418 = vlaneseq
        %v419 = vshrl.u32 %v418, 7
        %v420 = vadd.s32 %v419, 8
        %v421 = vadd.s32 %v419, 16
        %v422 = vadd.s32 %v419, 24
        %v423 = vadd.s32 %v419, 32
        %v424 = vadd.s32 %v419, 40
        %v425 = vadd.s32 %v419, 48
        %v426 = vadd.s32 %v419, 56
        %vm427 = vcmp.lt.s32.totalorder %v419, 8
        %vm428 = vcmp.lt.s32.totalorder %v420, 8
        %vm429 = vcmp.lt.s32.totalorder %v421, 8
        %vm430 = vcmp.lt.s32.totalorder %v422, 8
        %vm431 = vcmp.lt.s32.totalorder %v423, 8
        %vm432 = vcmp.lt.s32.totalorder %v424, 8
        %vm433 = vcmp.lt.s32.totalorder %v425, 8
        %vm434 = vcmp.lt.s32.totalorder %v426, 8
        %v435 = vsel %vm427, 1, 0
        %v436 = vsel %vm428, 1, 0
        %v437 = vsel %vm429, 1, 0
        %v438 = vsel %vm430, 1, 0
        %v439 = vsel %vm431, 1, 0
        %v440 = vsel %vm432, 1, 0
        %v441 = vsel %vm433, 1, 0
        %v442 = vsel %vm434, 1, 0
        %v443 = vcvt.s32.f32 %v435
        %v444 = vcvt.s32.f32 %v436
        %v445 = vcvt.s32.f32 %v437
        %v446 = vcvt.s32.f32 %v438
        %v447 = vcvt.s32.f32 %v439
        %v448 = vcvt.s32.f32 %v440
        %v449 = vcvt.s32.f32 %v441
        %v450 = vcvt.s32.f32 %v442
        %v451 = vmul.f32 %v348, %v443
        %v452 = vmul.f32 %v349, %v444
        %v453 = vmul.f32 %v350, %v445
        %v454 = vmul.f32 %v351, %v446
        %v455 = vmul.f32 %v352, %v447
        %v456 = vmul.f32 %v353, %v448
        %v457 = vmul.f32 %v354, %v449
        %v458 = vmul.f32 %v355, %v450
        %v459 = vadd.f32 %v451, %v452
        %v460 = vadd.f32 %v459, %v453
        %v461 = vadd.f32 %v460, %v454
        %v462 = vadd.f32 %v461, %v455
        %v463 = vadd.f32 %v462, %v456
        %v464 = vadd.f32 %v463, %v457
        %v465 = vadd.f32 %v464, %v458
        %v466 = vrot.slane %v465, 4
        %v467 = vadd.f32 %v465, %v466
        %v468 = vrot.slane %v467, 2
        %v469 = vadd.f32 %v467, %v468
        %v470 = vrot.slane %v469, 1
        %v471 = vadd.f32 %v469, %v470
        %v472 = vmul.f32 %v471, 0.125
        %v473 = vsub.f32 %v348, %v472
        %v474 = vsub.f32 %v349, %v472
        %v475 = vsub.f32 %v350, %v472
        %v476 = vsub.f32 %v351, %v472
        %v477 = vsub.f32 %v352, %v472
        %v478 = vsub.f32 %v353, %v472
        %v479 = vsub.f32 %v354, %v472
        %v480 = vsub.f32 %v355, %v472
        %v481 = vmul.f32 %v473, %v443
        %v482 = vmul.f32 %v474, %v444
        %v483 = vmul.f32 %v475, %v445
        %v484 = vmul.f32 %v476, %v446
        %v485 = vmul.f32 %v477, %v447
        %v486 = vmul.f32 %v478, %v448
        %v487 = vmul.f32 %v479, %v449
        %v488 = vmul.f32 %v480, %v450
        %v489 = vmul.f32 %v481, %v481
        %v490 = vmul.f32 %v482, %v482
        %v491 = vmul.f32 %v483, %v483
        %v492 = vmul.f32 %v484, %v484
        %v493 = vmul.f32 %v485, %v485
        %v494 = vmul.f32 %v486, %v486
        %v495 = vmul.f32 %v487, %v487
        %v496 = vmul.f32 %v488, %v488
        %v497 = vadd.f32 %v489, %v490
        %v498 = vadd.f32 %v497, %v491
        %v499 = vadd.f32 %v498, %v492
        %v500 = vadd.f32 %v499, %v493
        %v501 = vadd.f32 %v500, %v494
        %v502 = vadd.f32 %v501, %v495
        %v503 = vadd.f32 %v502, %v496
        %v504 = vrot.slane %v503, 4
        %v505 = vadd.f32 %v503, %v504
        %v506 = vrot.slane %v505, 2
        %v507 = vadd.f32 %v505, %v506
        %v508 = vrot.slane %v507, 1
        %v509 = vadd.f32 %v507, %v508
        %vm510 = vcmask 1040384
        %v511 = vsel %vm510, %v471, %v509
        %512 = vst [vmem:[%s211] sm:$0x3] %v511
      $region40: #{_lambda_.3} parent=31 // pred_fallthru
        _
      %s513 = smul.u32 8, %s16
      %p514 = scmp.lt.s32.totalorder %s513, 31
      %s515 = scalar_select %p514, %s513, 31
      %s516 = smul.addr %s515, 8
      %s517 = scalar_lea.vmem %s3, %s516
      %p518 = scmp.lt.s32.totalorder %s16, 3
      %s519 = scalar_select %p518, %s16, 3
      %s520 = smul.addr %s519, 2
      %s521 = scalar_lea.vmem %s4, %s520
      // Predicated region
      $region41: #{_lambda_.3} parent=31 // pred_check
        %p522 = pneg %p102
      $region42: #{_lambda_.3} parent=31 // pred_check_branch
        %524 = sbr.rel (%p522) target = $region44
      $region43: #{_lambda_.3} parent=31 // pred_region
        %s525 = smul.u32 8, %s16
      $region44: #{_lambda_.3} parent=31 // pred_fallthru
        _
      // Predicated region
      $region45: #{_lambda_.3} parent=31 // pred_check
        %p526 = pneg %p128
      $region46: #{_lambda_.3} parent=31 // pred_check_branch
        %528 = sbr.rel (%p526) target = $region48
      $region47: #{_lambda_.3} parent=31 // pred_region
        _
      $region48: #{_lambda_.3} parent=31 // pred_fallthru
        _
    $region32: #{_lambda_.3} parent=5 // pred_fallthru
      _
    %p529 = scmp.le.s32.totalorder 2, %s11
    // Predicated region
    $region49: #{_lambda_.3} parent=5 // pred_check
      %p530 = pneg %p529
    $region50: #{_lambda_.3} parent=5 // pred_check_branch
      %532 = sbr.rel (%p530) target = $region52
    $region51: #{_lambda_.3} parent=5 // pred_region
      %s533 = ssub.s32 %s11, 2
      // Predicated region
      $region53: #{_lambda_.3} parent=51 // pred_check
        %p534 = pneg %p108
      $region54: #{_lambda_.3} parent=51 // pred_check_branch
        %536 = sbr.rel (%p534) target = $region56
      $region55: #{_lambda_.3} parent=51 // pred_region
        %s537 = smul.u32 8, %s17
        %p538 = scmp.lt.s32.totalorder %s537, 31
        %s539 = scalar_select %p538, %s537, 31
        %s540 = smul.addr %s539, 8
        %s541 = scalar_lea.vmem %s3, %s540
      $region56: #{_lambda_.3} parent=51 // pred_fallthru
        _
      // Predicated region
      $region57: #{_lambda_.3} parent=51 // pred_check
        %p542 = pneg %p134
      $region58: #{_lambda_.3} parent=51 // pred_check_branch
        %544 = sbr.rel (%p542) target = $region60
      $region59: #{_lambda_.3} parent=51 // pred_region
        %p545 = scmp.lt.s32.totalorder %s17, 3
        %s546 = scalar_select %p545, %s17, 3
        %s547 = smul.addr %s546, 2
        %s548 = scalar_lea.vmem %s4, %s547
      $region60: #{_lambda_.3} parent=51 // pred_fallthru
        _
    $region52: #{_lambda_.3} parent=5 // pred_fallthru
      _
  $region6: #{_lambda_.3} parent=0 // loop_footer
    %s15 = sadd.s32 1, %s11
  $region7: #{_lambda_.3} parent=0 // loop_footer_branch
    %10 = sbr.rel target = $region3
  $region8: #{_lambda_.3} parent=0 // loop_exit
    _

// kernel: _lambda_.4
$region0: #{_lambda_.4}
  #allocation0 [shape = 'u32[]', space=smem, size = 0x4, offset = 0x4, fixed_abs, tag = 'smem constant byte address 0x4 - core index']
  #allocation1 [shape = 'u32[144,128]{1,0:T(1,128)}', space=vmem, size = 0x12000, scoped, tag = 'internal scratch']
  %s0 = inlined_call_operand.vmem [shape: f32[256,128], index: 0, kind: input, shape index: {}]
  %s1 = inlined_call_operand.vmem [shape: f32[1,128], index: 1, kind: input, shape index: {}]
  %s2 = inlined_call_operand.vmem [shape: f32[1,128], index: 2, kind: input, shape index: {}]
  %s3 = inlined_call_operand.vmem [shape: f32[128,128], index: 3, kind: input, shape index: {}]
  %s4 = inlined_call_operand.vmem [shape: f32[1,128], index: 4, kind: input, shape index: {}]
  %s5 = inlined_call_operand.vmem [shape: f32[256,128], index: 5, kind: output, shape index: {0}]
  %s6 = inlined_call_operand.vmem [shape: f32[4,2,128], index: 6, kind: output, shape index: {1}]
  %7 = xla_tuple %s5, %s6
  %s8 = sld [smem:[#allocation0]]
  $region69: #{_lambda_.4} parent=0
    _
  %s10 = ssub.s32 1, %s8
  %s11 = scalar_select 0, %s10, %s8
  loop: start=0, step=1, limit=6
  $region2: #{_lambda_.4} parent=0 // loop_pre_header
    _
  $region3: #{_lambda_.4} parent=0 // loop_header
    %s13 = sphi 0, %s17
    %p14 = scmp.ge.s32.totalorder %s13, 6
    %s23 = sphi 0, %s25
    %s26 = sphi 0, %s23
    %s27 = sphi 0, %s26
    %s43 = sphi 0, %s27
    %s47 = sphi 0, %s47
    %s49 = sphi 0, %s47
    %s50 = sphi 0, %s49
    %s64 = sphi 0, %s50
    %s68 = sphi 0, %s68
    %s70 = sphi 0, %s68
    %s71 = sphi 0, %s70
    %s85 = sphi 0, %s71
    %s89 = sphi 0, %s89
    %s91 = sphi 0, %s89
    %s92 = sphi 0, %s91
    %s106 = sphi 0, %s92
    %s110 = sphi 0, %s110
    %s112 = sphi 0, %s110
    %s113 = sphi 0, %s112
    %s127 = sphi 0, %s113
    %s133 = sphi 0, %s135
    %s136 = sphi 0, %s133
    %s137 = sphi 0, %s136
    %s153 = sphi 0, %s137
    %s159 = sphi 0, %s161
    %s162 = sphi 0, %s159
    %s163 = sphi 0, %s162
    %s179 = sphi 0, %s163
  $region4: #{_lambda_.4} parent=0 // loop_header_branch
    %16 = sbr.rel (%p14) target = $region8
  $region5: #{_lambda_.4} parent=0 // loop_body
    %s18 = ssub.s32 %s13, 1
    %s19 = ssub.s32 %s13, 2
    %s20 = sadd.s32 %s13, 1
    %s21 = ssub.s32 %s13, %s20
    %p22 = scmp.eq.s32.totalorder %s21, 0
    %s24 = sadd.s32 %s23, 1
    %s25 = scalar_select %p22, %s23, %s24
    %p28 = pneg %p22
    %p29 = scmp.eq.s32.totalorder %s13, 3
    %p30 = por %p28, %p29
    %p31 = scmp.ne.s32.totalorder %s23, %s26
    %p32 = scmp.eq.s32.totalorder %s13, 0
    %p33 = por %p31, %p32
    %p34 = scmp.ne.s32.totalorder %s23, %s26
    %p35 = scmp.eq.s32.totalorder %s18, 3
    %p36 = por %p34, %p35
    %p37 = scmp.ne.s32.totalorder %s26, %s27
    %p38 = scmp.eq.s32.totalorder %s18, 0
    %p39 = por %p37, %p38
    %p40 = scmp.ne.s32.totalorder %s26, %s27
    %p41 = scmp.eq.s32.totalorder %s19, 3
    %p42 = por %p40, %p41
    %p44 = scmp.ne.s32.totalorder %s27, %s43
    %p45 = scmp.eq.s32.totalorder %s19, 0
    %p46 = por %p44, %p45
    %s48 = sadd.s32 %s47, 1
    %p51 = scmp.eq.s32.totalorder %s13, 3
    %p52 = scmp.ne.s32.totalorder %s47, %s49
    %p53 = scmp.eq.s32.totalorder %s13, 0
    %p54 = por %p52, %p53
    %p55 = scmp.ne.s32.totalorder %s47, %s49
    %p56 = scmp.eq.s32.totalorder %s18, 3
    %p57 = por %p55, %p56
    %p58 = scmp.ne.s32.totalorder %s49, %s50
    %p59 = scmp.eq.s32.totalorder %s18, 0
    %p60 = por %p58, %p59
    %p61 = scmp.ne.s32.totalorder %s49, %s50
    %p62 = scmp.eq.s32.totalorder %s19, 3
    %p63 = por %p61, %p62
    %p65 = scmp.ne.s32.totalorder %s50, %s64
    %p66 = scmp.eq.s32.totalorder %s19, 0
    %p67 = por %p65, %p66
    %s69 = sadd.s32 %s68, 1
    %p72 = scmp.eq.s32.totalorder %s13, 3
    %p73 = scmp.ne.s32.totalorder %s68, %s70
    %p74 = scmp.eq.s32.totalorder %s13, 0
    %p75 = por %p73, %p74
    %p76 = scmp.ne.s32.totalorder %s68, %s70
    %p77 = scmp.eq.s32.totalorder %s18, 3
    %p78 = por %p76, %p77
    %p79 = scmp.ne.s32.totalorder %s70, %s71
    %p80 = scmp.eq.s32.totalorder %s18, 0
    %p81 = por %p79, %p80
    %p82 = scmp.ne.s32.totalorder %s70, %s71
    %p83 = scmp.eq.s32.totalorder %s19, 3
    %p84 = por %p82, %p83
    %p86 = scmp.ne.s32.totalorder %s71, %s85
    %p87 = scmp.eq.s32.totalorder %s19, 0
    %p88 = por %p86, %p87
    %s90 = sadd.s32 %s89, 1
    %p93 = scmp.eq.s32.totalorder %s13, 3
    %p94 = scmp.ne.s32.totalorder %s89, %s91
    %p95 = scmp.eq.s32.totalorder %s13, 0
    %p96 = por %p94, %p95
    %p97 = scmp.ne.s32.totalorder %s89, %s91
    %p98 = scmp.eq.s32.totalorder %s18, 3
    %p99 = por %p97, %p98
    %p100 = scmp.ne.s32.totalorder %s91, %s92
    %p101 = scmp.eq.s32.totalorder %s18, 0
    %p102 = por %p100, %p101
    %p103 = scmp.ne.s32.totalorder %s91, %s92
    %p104 = scmp.eq.s32.totalorder %s19, 3
    %p105 = por %p103, %p104
    %p107 = scmp.ne.s32.totalorder %s92, %s106
    %p108 = scmp.eq.s32.totalorder %s19, 0
    %p109 = por %p107, %p108
    %s111 = sadd.s32 %s110, 1
    %p114 = scmp.eq.s32.totalorder %s13, 3
    %p115 = scmp.ne.s32.totalorder %s110, %s112
    %p116 = scmp.eq.s32.totalorder %s13, 0
    %p117 = por %p115, %p116
    %p118 = scmp.ne.s32.totalorder %s110, %s112
    %p119 = scmp.eq.s32.totalorder %s18, 3
    %p120 = por %p118, %p119
    %p121 = scmp.ne.s32.totalorder %s112, %s113
    %p122 = scmp.eq.s32.totalorder %s18, 0
    %p123 = por %p121, %p122
    %p124 = scmp.ne.s32.totalorder %s112, %s113
    %p125 = scmp.eq.s32.totalorder %s19, 3
    %p126 = por %p124, %p125
    %p128 = scmp.ne.s32.totalorder %s113, %s127
    %p129 = scmp.eq.s32.totalorder %s19, 0
    %p130 = por %p128, %p129
    %s131 = ssub.s32 %s13, %s20
    %p132 = scmp.eq.s32.totalorder %s131, 0
    %s134 = sadd.s32 %s133, 1
    %s135 = scalar_select %p132, %s133, %s134
    %p138 = pneg %p132
    %p139 = scmp.eq.s32.totalorder %s13, 3
    %p140 = por %p138, %p139
    %p141 = scmp.ne.s32.totalorder %s133, %s136
    %p142 = scmp.eq.s32.totalorder %s13, 0
    %p143 = por %p141, %p142
    %p144 = scmp.ne.s32.totalorder %s133, %s136
    %p145 = scmp.eq.s32.totalorder %s18, 3
    %p146 = por %p144, %p145
    %p147 = scmp.ne.s32.totalorder %s136, %s137
    %p148 = scmp.eq.s32.totalorder %s18, 0
    %p149 = por %p147, %p148
    %p150 = scmp.ne.s32.totalorder %s136, %s137
    %p151 = scmp.eq.s32.totalorder %s19, 3
    %p152 = por %p150, %p151
    %p154 = scmp.ne.s32.totalorder %s137, %s153
    %p155 = scmp.eq.s32.totalorder %s19, 0
    %p156 = por %p154, %p155
    %s157 = ssub.s32 %s13, %s20
    %p158 = scmp.eq.s32.totalorder %s157, 0
    %s160 = sadd.s32 %s159, 1
    %s161 = scalar_select %p158, %s159, %s160
    %p164 = pneg %p158
    %p165 = scmp.eq.s32.totalorder %s13, 3
    %p166 = por %p164, %p165
    %p167 = scmp.ne.s32.totalorder %s159, %s162
    %p168 = scmp.eq.s32.totalorder %s13, 0
    %p169 = por %p167, %p168
    %p170 = scmp.ne.s32.totalorder %s159, %s162
    %p171 = scmp.eq.s32.totalorder %s18, 3
    %p172 = por %p170, %p171
    %p173 = scmp.ne.s32.totalorder %s162, %s163
    %p174 = scmp.eq.s32.totalorder %s18, 0
    %p175 = por %p173, %p174
    %p176 = scmp.ne.s32.totalorder %s162, %s163
    %p177 = scmp.eq.s32.totalorder %s19, 3
    %p178 = por %p176, %p177
    %p180 = scmp.ne.s32.totalorder %s163, %s179
    %p181 = scmp.eq.s32.totalorder %s19, 0
    %p182 = por %p180, %p181
    %p183 = scmp.le.s32.totalorder 1, %s13
    %p184 = scmp.lt.s32.totalorder %s13, 5
    %p185 = pnand %p183, %p184
    %p186 = pneg %p185
    // Predicated region
    $region9: #{_lambda_.4} parent=5 // pred_check
      _
    $region10: #{_lambda_.4} parent=5 // pred_check_branch
      %188 = sbr.rel (%p185) target = $region12
    $region11: #{_lambda_.4} parent=5 // pred_region
      %s189 = ssub.s32 %s13, 1
      // Predicated region
      $region13: #{_lambda_.4} parent=11 // pred_check
        %p190 = pneg %p60
      $region14: #{_lambda_.4} parent=11 // pred_check_branch
        %192 = sbr.rel (%p190) target = $region16
      $region15: #{_lambda_.4} parent=11 // pred_region
        _
      $region16: #{_lambda_.4} parent=11 // pred_fallthru
        _
      // Predicated region
      $region17: #{_lambda_.4} parent=11 // pred_check
        %p193 = pneg %p81
      $region18: #{_lambda_.4} parent=11 // pred_check_branch
        %195 = sbr.rel (%p193) target = $region20
      $region19: #{_lambda_.4} parent=11 // pred_region
        _
      $region20: #{_lambda_.4} parent=11 // pred_fallthru
        _
      // Predicated region
      $region21: #{_lambda_.4} parent=11 // pred_check
        %p196 = pneg %p102
      $region22: #{_lambda_.4} parent=11 // pred_check_branch
        %198 = sbr.rel (%p196) target = $region24
      $region23: #{_lambda_.4} parent=11 // pred_region
        _
      $region24: #{_lambda_.4} parent=11 // pred_fallthru
        _
      // Predicated region
      $region25: #{_lambda_.4} parent=11 // pred_check
        %p199 = pneg %p123
      $region26: #{_lambda_.4} parent=11 // pred_check_branch
        %201 = sbr.rel (%p199) target = $region28
      $region27: #{_lambda_.4} parent=11 // pred_region
        _
      $region28: #{_lambda_.4} parent=11 // pred_fallthru
        _
    $region12: #{_lambda_.4} parent=5 // pred_fallthru
      _
    %p202 = scmp.lt.s32.totalorder %s13, 4
    // Predicated region
    $region29: #{_lambda_.4} parent=5 // pred_check
      %p203 = pneg %p202
    $region30: #{_lambda_.4} parent=5 // pred_check_branch
      %205 = sbr.rel (%p203) target = $region32
    $region31: #{_lambda_.4} parent=5 // pred_region
      // Predicated region
      $region33: #{_lambda_.4} parent=31 // pred_check
        %p206 = pneg %p33
      $region34: #{_lambda_.4} parent=31 // pred_check_branch
        %208 = sbr.rel (%p206) target = $region36
      $region35: #{_lambda_.4} parent=31 // pred_region
        %s209 = smul.u32 8, %s13
        %p210 = scmp.lt.s32.totalorder %s209, 31
        %s211 = scalar_select %p210, %s209, 31
        %s212 = smul.addr %s211, 8
        %s213 = scalar_lea.vmem %s0, %s212
        %s214 = smul.u32 8, %s13
      $region36: #{_lambda_.4} parent=31 // pred_fallthru
        _
    $region32: #{_lambda_.4} parent=5 // pred_fallthru
      _
    %p215 = scmp.le.s32.totalorder 1, %s13
    %p216 = scmp.lt.s32.totalorder %s13, 5
    %p217 = pnand %p215, %p216
    %p218 = pneg %p217
    // Predicated region
    $region37: #{_lambda_.4} parent=5 // pred_check
      _
    $region38: #{_lambda_.4} parent=5 // pred_check_branch
      %220 = sbr.rel (%p217) target = $region40
    $region39: #{_lambda_.4} parent=5 // pred_region
      %s221 = ssub.s32 %s13, 1
      %s222 = smul.u32 8, %s18
      %p223 = scmp.lt.s32.totalorder %s222, 31
      %s224 = scalar_select %p223, %s222, 31
      %s225 = smul.addr %s224, 8
      %s226 = scalar_lea.vmem %s0, %s225
      %p227 = pneg %p39
      %p228 = pneg %p36
      %p229 = pneg %p60
      %p230 = pneg %p57
      %p231 = pneg %p81
      %p232 = pneg %p78
      %p233 = pneg %p102
      %p234 = pneg %p99
      %p235 = pneg %p123
      %p236 = pneg %p120
      %p237 = pneg %p149
      %p238 = pneg %p146
      %s239 = smul.u32 8, %s18
      %p240 = scmp.lt.s32.totalorder %s239, 31
      %s241 = scalar_select %p240, %s239, 31
      %s242 = smul.addr %s241, 8
      %s243 = scalar_lea.vmem %s5, %s242
      %p244 = pneg %p175
      %p245 = pneg %p172
      %p246 = scmp.lt.s32.totalorder %s18, 3
      %s247 = scalar_select %p246, %s18, 3
      %s248 = smul.addr %s247, 2
      %s249 = scalar_lea.vmem %s6, %s248
      %s250 = smul.u32 8, %s18
      %p251 = scmp.lt.s32.totalorder %s250, 31
      %s252 = scalar_select %p251, %s250, 31
      %s253 = smul.addr %s252, 8
      %s254 = scalar_lea.vmem %s0, %s253
      %s255 = smul.u32 8, %s18
      %s256 = smul.u32 8, %s18
      %p257 = scmp.lt.s32.totalorder %s256, 31
      %s258 = scalar_select %p257, %s256, 31
      %s259 = smul.addr %s258, 8
      %s260 = scalar_lea.vmem %s5, %s259
      %s261 = smul.u32 8, %s18
      %p262 = scmp.lt.s32.totalorder %s18, 3
      %s263 = scalar_select %p262, %s18, 3
      %s264 = smul.addr %s263, 2
      %s265 = scalar_lea.vmem %s6, %s264
      %v266 = vld [vmem:[%s254] sm:$0xff]
      %v267 = vld [vmem:[%s254 + $0x8] sm:$0xff]
      %v268 = vld [vmem:[%s254 + $0x10] sm:$0xff]
      %v269 = vld [vmem:[%s254 + $0x18] sm:$0xff]
      %v270 = vld [vmem:[%s254 + $0x20] sm:$0xff]
      %v271 = vld [vmem:[%s254 + $0x28] sm:$0xff]
      %v272 = vld [vmem:[%s254 + $0x30] sm:$0xff]
      %v273 = vld [vmem:[%s254 + $0x38] sm:$0xff]
      %v274 = vld [vmem:[%s1] sm:$0x1]
      %v276 = vlaneseq
      %v277 = vshrl.u32 %v276, 7
      %v278 = vsub.s32 0, %v277
      %v279 = vrot.slane %v274, %v278
      %v281 = vmul.f32 %v266, %v279
      %v282 = vmul.f32 %v267, %v279
      %v283 = vmul.f32 %v268, %v279
      %v284 = vmul.f32 %v269, %v279
      %v285 = vmul.f32 %v270, %v279
      %v286 = vmul.f32 %v271, %v279
      %v287 = vmul.f32 %v272, %v279
      %v288 = vmul.f32 %v273, %v279
      %v289 = vld [vmem:[%s2] sm:$0x1]
      %v291 = vlaneseq
      %v292 = vshrl.u32 %v291, 7
      %v293 = vsub.s32 0, %v292
      %v294 = vrot.slane %v289, %v293
      %v296 = vadd.f32 %v281, %v294
      %v297 = vadd.f32 %v282, %v294
      %v298 = vadd.f32 %v283, %v294
      %v299 = vadd.f32 %v284, %v294
      %v300 = vadd.f32 %v285, %v294
      %v301 = vadd.f32 %v286, %v294
      %v302 = vadd.f32 %v287, %v294
      %v303 = vadd.f32 %v288, %v294
      %v304 = vld [vmem:[%s3] sm:$0xff]
      %v305 = vld [vmem:[%s3 + $0x8] sm:$0xff]
      %v306 = vld [vmem:[%s3 + $0x10] sm:$0xff]
      %v307 = vld [vmem:[%s3 + $0x18] sm:$0xff]
      %v308 = vld [vmem:[%s3 + $0x20] sm:$0xff]
      %v309 = vld [vmem:[%s3 + $0x28] sm:$0xff]
      %v310 = vld [vmem:[%s3 + $0x30] sm:$0xff]
      %v311 = vld [vmem:[%s3 + $0x38] sm:$0xff]
      %v312 = vld [vmem:[%s3 + $0x40] sm:$0xff]
      %v313 = vld [vmem:[%s3 + $0x48] sm:$0xff]
      %v314 = vld [vmem:[%s3 + $0x50] sm:$0xff]
      %v315 = vld [vmem:[%s3 + $0x58] sm:$0xff]
      %v316 = vld [vmem:[%s3 + $0x60] sm:$0xff]
      %v317 = vld [vmem:[%s3 + $0x68] sm:$0xff]
      %v318 = vld [vmem:[%s3 + $0x70] sm:$0xff]
      %v319 = vld [vmem:[%s3 + $0x78] sm:$0xff]
      %v320 = vld [vmem:[%s4] sm:$0x1]
      %v322 = vlaneseq
      %v323 = vshrl.u32 %v322, 7
      %v324 = vsub.s32 0, %v323
      %v325 = vrot.slane %v320, %v324
      %327 = vmatprep.subr.mxu0 0.0
      %328 = vmatpush1.msra.mxu0 %v319
      %329 = vmatprep.subr.mxu0 0.0
      %330 = vmatpush1.msra.mxu0 %v318
      %331 = vmatprep.subr.mxu0 0.0
      %332 = vmatpush1.msra.mxu0 %v317
      %333 = vmatprep.subr.mxu0 0.0
      %334 = vmatpush1.msra.mxu0 %v316
      %335 = vmatprep.subr.mxu0 0.0
      %336 = vmatpush1.msra.mxu0 %v315
      %337 = vmatprep.subr.mxu0 0.0
      %338 = vmatpush1.msra.mxu0 %v314
      %339 = vmatprep.subr.mxu0 0.0
      %340 = vmatpush1.msra.mxu0 %v313
      %341 = vmatprep.subr.mxu0 0.0
      %342 = vmatpush1.msra.mxu0 %v312
      %343 = vmatprep.subr.mxu0 0.0
      %344 = vmatpush1.msra.mxu0 %v311
      %345 = vmatprep.subr.mxu0 0.0
      %346 = vmatpush1.msra.mxu0 %v310
      %347 = vmatprep.subr.mxu0 0.0
      %348 = vmatpush1.msra.mxu0 %v309
      %349 = vmatprep.subr.mxu0 0.0
      %350 = vmatpush1.msra.mxu0 %v308
      %351 = vmatprep.subr.mxu0 0.0
      %352 = vmatpush1.msra.mxu0 %v307
      %353 = vmatprep.subr.mxu0 0.0
      %354 = vmatpush1.msra.mxu0 %v306
      %355 = vmatprep.subr.mxu0 0.0
      %356 = vmatpush1.msra.mxu0 %v305
      %357 = vmatprep.subr.mxu0 0.0
      %358 = vmatpush1.msra.mxu0 %v304
      %359 = vmatprep.subr.mxu0 0.0
      %360 = vmatpush2.msra.mxu0 0.0
      %361 = vmatprep.subr.mxu0 0.0
      %362 = vmatpush2.msra.mxu0 0.0
      %363 = vmatprep.subr.mxu0 0.0
      %364 = vmatpush2.msra.mxu0 0.0
      %365 = vmatprep.subr.mxu0 0.0
      %366 = vmatpush2.msra.mxu0 0.0
      %367 = vmatprep.subr.mxu0 0.0
      %368 = vmatpush2.msra.mxu0 0.0
      %369 = vmatprep.subr.mxu0 0.0
      %370 = vmatpush2.msra.mxu0 0.0
      %371 = vmatprep.subr.mxu0 0.0
      %372 = vmatpush2.msra.mxu0 0.0
      %373 = vmatprep.subr.mxu0 0.0
      %374 = vmatpush2.msra.mxu0 0.0
      %375 = vmatprep.subr.mxu0 0.0
      %376 = vmatpush2.msra.mxu0 0.0
      %377 = vmatprep.subr.mxu0 0.0
      %378 = vmatpush2.msra.mxu0 0.0
      %379 = vmatprep.subr.mxu0 0.0
      %380 = vmatpush2.msra.mxu0 0.0
      %381 = vmatprep.subr.mxu0 0.0
      %382 = vmatpush2.msra.mxu0 0.0
      %383 = vmatprep.subr.mxu0 0.0
      %384 = vmatpush2.msra.mxu0 0.0
      %385 = vmatprep.subr.mxu0 0.0
      %386 = vmatpush2.msra.mxu0 0.0
      %387 = vmatprep.subr.mxu0 0.0
      %388 = vmatpush2.msra.mxu0 0.0
      %389 = vmatprep.subr.mxu0 0.0
      %390 = vmatpush2.msra.mxu0 0.0
      %391 = vmatprep.mubr.f32.mxu0 0.0
      %392 = vmatmul.mubr.f32.gmra.mxu0 %v296
      %v393 = vpop.f32.mrf.mxu0
      %v394 = vadd.f32 %v325, %v393
      %v395 = vpop.f32.mrf.mxu0
      %396 = vmatprep.mubr.f32.mxu0 0.0
      %397 = vmatmul.mubr.f32.gmra.mxu0 %v297
      %v398 = vpop.f32.mrf.mxu0
      %v399 = vadd.f32 %v325, %v398
      %v400 = vpop.f32.mrf.mxu0
      %401 = vmatprep.mubr.f32.mxu0 0.0
      %402 = vmatmul.mubr.f32.gmra.mxu0 %v298
      %v403 = vpop.f32.mrf.mxu0
      %v404 = vadd.f32 %v325, %v403
      %v405 = vpop.f32.mrf.mxu0
      %406 = vmatprep.mubr.f32.mxu0 0.0
      %407 = vmatmul.mubr.f32.gmra.mxu0 %v299
      %v408 = vpop.f32.mrf.mxu0
      %v409 = vadd.f32 %v325, %v408
      %v410 = vpop.f32.mrf.mxu0
      %411 = vmatprep.mubr.f32.mxu0 0.0
      %412 = vmatmul.mubr.f32.gmra.mxu0 %v300
      %v413 = vpop.f32.mrf.mxu0
      %v414 = vadd.f32 %v325, %v413
      %v415 = vpop.f32.mrf.mxu0
      %416 = vmatprep.mubr.f32.mxu0 0.0
      %417 = vmatmul.mubr.f32.gmra.mxu0 %v301
      %v418 = vpop.f32.mrf.mxu0
      %v419 = vadd.f32 %v325, %v418
      %v420 = vpop.f32.mrf.mxu0
      %421 = vmatprep.mubr.f32.mxu0 0.0
      %422 = vmatmul.mubr.f32.gmra.mxu0 %v302
      %v423 = vpop.f32.mrf.mxu0
      %v424 = vadd.f32 %v325, %v423
      %v425 = vpop.f32.mrf.mxu0
      %426 = vmatprep.mubr.f32.mxu0 0.0
      %427 = vmatmul.mubr.f32.gmra.mxu0 %v303
      %v428 = vpop.f32.mrf.mxu0
      %v429 = vadd.f32 %v325, %v428
      %v430 = vpop.f32.mrf.mxu0
      %431 = vdwg.mxu0
      %v432 = vmax.f32 %v394, 0.0
      %v433 = vmax.f32 %v399, 0.0
      %v434 = vmax.f32 %v404, 0.0
      %v435 = vmax.f32 %v409, 0.0
      %v436 = vmax.f32 %v414, 0.0
      %v437 = vmax.f32 %v419, 0.0
      %v438 = vmax.f32 %v424, 0.0
      %v439 = vmax.f32 %v429, 0.0
      %440 = vst [vmem:[%s260] sm:$0xff] %v432
      %441 = vst [vmem:[%s260 + $0x8] sm:$0xff] %v433
      %442 = vst [vmem:[%s260 + $0x10] sm:$0xff] %v434
      %443 = vst [vmem:[%s260 + $0x18] sm:$0xff] %v435
      %444 = vst [vmem:[%s260 + $0x20] sm:$0xff] %v436
      %445 = vst [vmem:[%s260 + $0x28] sm:$0xff] %v437
      %446 = vst [vmem:[%s260 + $0x30] sm:$0xff] %v438
      %447 = vst [vmem:[%s260 + $0x38] sm:$0xff] %v439
      %p448 = scmp.ne.s32.totalorder %s18, 3
      // Predicated region
      $region41: #{_lambda_.4} parent=39 // pred_check
        %p449 = pneg %p448
      $region42: #{_lambda_.4} parent=39 // pred_check_branch
        %451 = sbr.rel (%p449) target = $region44
      $region43: #{_lambda_.4} parent=39 // pred_region
        %v452 = vadd.f32 %v432, %v433
        %v453 = vadd.f32 %v452, %v434
        %v454 = vadd.f32 %v453, %v435
        %v455 = vadd.f32 %v454, %v436
        %v456 = vadd.f32 %v455, %v437
        %v457 = vadd.f32 %v456, %v438
        %v458 = vadd.f32 %v457, %v439
        %v459 = vrot.slane %v458, 4
        %v460 = vadd.f32 %v458, %v459
        %v461 = vrot.slane %v460, 2
        %v462 = vadd.f32 %v460, %v461
        %v463 = vrot.slane %v462, 1
        %v464 = vadd.f32 %v462, %v463
        %v465 = vmul.f32 %v464, 0.015625
        %v466 = vsub.f32 %v432, %v465
        %v467 = vsub.f32 %v433, %v465
        %v468 = vsub.f32 %v434, %v465
        %v469 = vsub.f32 %v435, %v465
        %v470 = vsub.f32 %v436, %v465
        %v471 = vsub.f32 %v437, %v465
        %v472 = vsub.f32 %v438, %v465
        %v473 = vsub.f32 %v439, %v465
        %v474 = vmul.f32 %v466, %v466
        %v475 = vmul.f32 %v467, %v467
        %v476 = vmul.f32 %v468, %v468
        %v477 = vmul.f32 %v469, %v469
        %v478 = vmul.f32 %v470, %v470
        %v479 = vmul.f32 %v471, %v471
        %v480 = vmul.f32 %v472, %v472
        %v481 = vmul.f32 %v473, %v473
        %v482 = vadd.f32 %v474, %v475
        %v483 = vadd.f32 %v482, %v476
        %v484 = vadd.f32 %v483, %v477
        %v485 = vadd.f32 %v484, %v478
        %v486 = vadd.f32 %v485, %v479
        %v487 = vadd.f32 %v486, %v480
        %v488 = vadd.f32 %v487, %v481
        %v489 = vrot.slane %v488, 4
        %v490 = vadd.f32 %v488, %v489
        %v491 = vrot.slane %v490, 2
        %v492 = vadd.f32 %v490, %v491
        %v493 = vrot.slane %v492, 1
        %v494 = vadd.f32 %v492, %v493
        %vm495 = vcmask 1040384
        %v496 = vsel %vm495, %v464, %v494
        %497 = vst [vmem:[%s265] sm:$0x3] %v496
      $region44: #{_lambda_.4} parent=39 // pred_fallthru
        _
      %p498 = scmp.eq.s32.totalorder %s18, 3
      // Predicated region
      $region45: #{_lambda_.4} parent=39 // pred_check
        %p499 = pneg %p498
      $region46: #{_lambda_.4} parent=39 // pred_check_branch
        %501 = sbr.rel (%p499) target = $region48
      $region47: #{_lambda_.4} parent=39 // pred_region
        %v502 = vlaneseq
        %v503 = vshrl.u32 %v502, 7
        %v504 = vadd.s32 %v503, 8
        %v505 = vadd.s32 %v503, 16
        %v506 = vadd.s32 %v503, 24
        %v507 = vadd.s32 %v503, 32
        %v508 = vadd.s32 %v503, 40
        %v509 = vadd.s32 %v503, 48
        %v510 = vadd.s32 %v503, 56
        %vm511 = vcmp.lt.s32.totalorder %v503, 8
        %vm512 = vcmp.lt.s32.totalorder %v504, 8
        %vm513 = vcmp.lt.s32.totalorder %v505, 8
        %vm514 = vcmp.lt.s32.totalorder %v506, 8
        %vm515 = vcmp.lt.s32.totalorder %v507, 8
        %vm516 = vcmp.lt.s32.totalorder %v508, 8
        %vm517 = vcmp.lt.s32.totalorder %v509, 8
        %vm518 = vcmp.lt.s32.totalorder %v510, 8
        %v519 = vsel %vm511, 1, 0
        %v520 = vsel %vm512, 1, 0
        %v521 = vsel %vm513, 1, 0
        %v522 = vsel %vm514, 1, 0
        %v523 = vsel %vm515, 1, 0
        %v524 = vsel %vm516, 1, 0
        %v525 = vsel %vm517, 1, 0
        %v526 = vsel %vm518, 1, 0
        %v527 = vcvt.s32.f32 %v519
        %v528 = vcvt.s32.f32 %v520
        %v529 = vcvt.s32.f32 %v521
        %v530 = vcvt.s32.f32 %v522
        %v531 = vcvt.s32.f32 %v523
        %v532 = vcvt.s32.f32 %v524
        %v533 = vcvt.s32.f32 %v525
        %v534 = vcvt.s32.f32 %v526
        %v535 = vmul.f32 %v432, %v527
        %v536 = vmul.f32 %v433, %v528
        %v537 = vmul.f32 %v434, %v529
        %v538 = vmul.f32 %v435, %v530
        %v539 = vmul.f32 %v436, %v531
        %v540 = vmul.f32 %v437, %v532
        %v541 = vmul.f32 %v438, %v533
        %v542 = vmul.f32 %v439, %v534
        %v543 = vadd.f32 %v535, %v536
        %v544 = vadd.f32 %v543, %v537
        %v545 = vadd.f32 %v544, %v538
        %v546 = vadd.f32 %v545, %v539
        %v547 = vadd.f32 %v546, %v540
        %v548 = vadd.f32 %v547, %v541
        %v549 = vadd.f32 %v548, %v542
        %v550 = vrot.slane %v549, 4
        %v551 = vadd.f32 %v549, %v550
        %v552 = vrot.slane %v551, 2
        %v553 = vadd.f32 %v551, %v552
        %v554 = vrot.slane %v553, 1
        %v555 = vadd.f32 %v553, %v554
        %v556 = vmul.f32 %v555, 0.125
        %v557 = vsub.f32 %v432, %v556
        %v558 = vsub.f32 %v433, %v556
        %v559 = vsub.f32 %v434, %v556
        %v560 = vsub.f32 %v435, %v556
        %v561 = vsub.f32 %v436, %v556
        %v562 = vsub.f32 %v437, %v556
        %v563 = vsub.f32 %v438, %v556
        %v564 = vsub.f32 %v439, %v556
        %v565 = vmul.f32 %v557, %v527
        %v566 = vmul.f32 %v558, %v528
        %v567 = vmul.f32 %v559, %v529
        %v568 = vmul.f32 %v560, %v530
        %v569 = vmul.f32 %v561, %v531
        %v570 = vmul.f32 %v562, %v532
        %v571 = vmul.f32 %v563, %v533
        %v572 = vmul.f32 %v564, %v534
        %v573 = vmul.f32 %v565, %v565
        %v574 = vmul.f32 %v566, %v566
        %v575 = vmul.f32 %v567, %v567
        %v576 = vmul.f32 %v568, %v568
        %v577 = vmul.f32 %v569, %v569
        %v578 = vmul.f32 %v570, %v570
        %v579 = vmul.f32 %v571, %v571
        %v580 = vmul.f32 %v572, %v572
        %v581 = vadd.f32 %v573, %v574
        %v582 = vadd.f32 %v581, %v575
        %v583 = vadd.f32 %v582, %v576
        %v584 = vadd.f32 %v583, %v577
        %v585 = vadd.f32 %v584, %v578
        %v586 = vadd.f32 %v585, %v579
        %v587 = vadd.f32 %v586, %v580
        %v588 = vrot.slane %v587, 4
        %v589 = vadd.f32 %v587, %v588
        %v590 = vrot.slane %v589, 2
        %v591 = vadd.f32 %v589, %v590
        %v592 = vrot.slane %v591, 1
        %v593 = vadd.f32 %v591, %v592
        %vm594 = vcmask 1040384
        %v595 = vsel %vm594, %v555, %v593
        %596 = vst [vmem:[%s265] sm:$0x3] %v595
      $region48: #{_lambda_.4} parent=39 // pred_fallthru
        _
      %s597 = smul.u32 8, %s18
      %p598 = scmp.lt.s32.totalorder %s597, 31
      %s599 = scalar_select %p598, %s597, 31
      %s600 = smul.addr %s599, 8
      %s601 = scalar_lea.vmem %s5, %s600
      %p602 = scmp.lt.s32.totalorder %s18, 3
      %s603 = scalar_select %p602, %s18, 3
      %s604 = smul.addr %s603, 2
      %s605 = scalar_lea.vmem %s6, %s604
      // Predicated region
      $region49: #{_lambda_.4} parent=39 // pred_check
        %p606 = pneg %p146
      $region50: #{_lambda_.4} parent=39 // pred_check_branch
        %608 = sbr.rel (%p606) target = $region52
      $region51: #{_lambda_.4} parent=39 // pred_region
        %s609 = smul.u32 8, %s18
      $region52: #{_lambda_.4} parent=39 // pred_fallthru
        _
      // Predicated region
      $region53: #{_lambda_.4} parent=39 // pred_check
        %p610 = pneg %p172
      $region54: #{_lambda_.4} parent=39 // pred_check_branch
        %612 = sbr.rel (%p610) target = $region56
      $region55: #{_lambda_.4} parent=39 // pred_region
        _
      $region56: #{_lambda_.4} parent=39 // pred_fallthru
        _
    $region40: #{_lambda_.4} parent=5 // pred_fallthru
      _
    %p613 = scmp.le.s32.totalorder 2, %s13
    // Predicated region
    $region57: #{_lambda_.4} parent=5 // pred_check
      %p614 = pneg %p613
    $region58: #{_lambda_.4} parent=5 // pred_check_branch
      %616 = sbr.rel (%p614) target = $region60
    $region59: #{_lambda_.4} parent=5 // pred_region
      %s617 = ssub.s32 %s13, 2
      // Predicated region
      $region61: #{_lambda_.4} parent=59 // pred_check
        %p618 = pneg %p152
      $region62: #{_lambda_.4} parent=59 // pred_check_branch
        %620 = sbr.rel (%p618) target = $region64
      $region63: #{_lambda_.4} parent=59 // pred_region
        %s621 = smul.u32 8, %s19
        %p622 = scmp.lt.s32.totalorder %s621, 31
        %s623 = scalar_select %p622, %s621, 31
        %s624 = smul.addr %s623, 8
        %s625 = scalar_lea.vmem %s5, %s624
      $region64: #{_lambda_.4} parent=59 // pred_fallthru
        _
      // Predicated region
      $region65: #{_lambda_.4} parent=59 // pred_check
        %p626 = pneg %p178
      $region66: #{_lambda_.4} parent=59 // pred_check_branch
        %628 = sbr.rel (%p626) target = $region68
      $region67: #{_lambda_.4} parent=59 // pred_region
        %p629 = scmp.lt.s32.totalorder %s19, 3
        %s630 = scalar_select %p629, %s19, 3
        %s631 = smul.addr %s630, 2
        %s632 = scalar_lea.vmem %s6, %s631
      $region68: #{_lambda_.4} parent=59 // pred_fallthru
        _
    $region60: #{_lambda_.4} parent=5 // pred_fallthru
      _
  $region6: #{_lambda_.4} parent=0 // loop_footer
    %s17 = sadd.s32 1, %s13
  $region7: #{_lambda_.4} parent=0 // loop_footer_branch
    %12 = sbr.rel target = $region3
  $region8: #{_lambda_.4} parent=0 // loop_exit
    _

</llo_original>
